<compile_context>
chip_gen: v6e
topology: v6e:2x2x1
jax: 0.10.0
libtpu: 0.0.40
codegen_flags: <defaults>
</compile_context>

<pallas_src>
import math

import jax
import jax.numpy as jnp
import numpy as np
from jax.experimental import pallas as pl
from jax.experimental.pallas import tpu as pltpu


# ----------------------------------------------------------------------------
# Fused Pallas kernel: entire InceptionCellB for one batch element.
# ----------------------------------------------------------------------------
def _make_inception_kernel(H, W):
    HW = H * W

    def _shift(x, s, fill):
        # y[:, p] = x[:, p + s] if 0 <= p + s < HW else fill    (s static, != 0)
        C = x.shape[0]
        pad = jnp.full((C, abs(s)), fill, x.dtype)
        if s > 0:
            return jnp.concatenate([x[:, s:], pad], axis=-1)
        return jnp.concatenate([pad, x[:, :HW + s]], axis=-1)

    def kernel(x_ref, hw_ref, hs_ref, hb_ref, l3w_ref, l3s_ref, l3b_ref,
               cw_ref, cs_ref, cb_ref, out_ref):
        x = x_ref[0]                              # (Cin, HW), lane-dense
        cout = l3w_ref.shape[0]

        # lane-position masks for horizontal (1x3) taps / pooling
        wpos = jax.lax.broadcasted_iota(jnp.int32, (1, HW), 1) % W
        not_first_col = wpos >= 1                 # access to w-1 is valid
        not_last_col = wpos <= W - 2              # access to w+1 is valid

        def conv3(y, wm, scale, bias, vertical):
            # y: (C, HW); wm: (Cout, 3*C), tap order [-1, 0, +1] along K
            if vertical:
                t0 = _shift(y, -W, 0.0)           # row h-1 (zeros at top)
                t2 = _shift(y, +W, 0.0)           # row h+1 (zeros at bottom)
            else:
                t0 = jnp.where(not_first_col, _shift(y, -1, 0.0), 0.0)
                t2 = jnp.where(not_last_col, _shift(y, +1, 0.0), 0.0)
            stacked = jnp.concatenate([t0, y, t2], axis=0)     # (3C, HW)
            z = jnp.dot(wm, stacked, preferred_element_type=jnp.float32)
            return jnp.maximum(z * scale + bias, 0.0)

        # ---- fused 1x1 heads: layer1[0], layer2[0], layer4 ------------------
        heads = jnp.dot(hw_ref[...], x, preferred_element_type=jnp.float32)
        heads = jnp.maximum(heads * hs_ref[...] + hb_ref[...], 0.0)
        y1 = heads[0:cout]
        y2 = heads[cout:2 * cout]
        y4 = heads[2 * cout:3 * cout]

        # ---- layer1 tail: (3,1), (1,3), (3,1), (1,3) ------------------------
        for i, vert in ((0, True), (1, False), (2, True), (3, False)):
            y1 = conv3(y1, cw_ref[i], cs_ref[i], cb_ref[i], vert)

        # ---- layer2 tail: (3,1), (1,3) --------------------------------------
        for i, vert in ((4, True), (5, False)):
            y2 = conv3(y2, cw_ref[i], cs_ref[i], cb_ref[i], vert)

        # ---- layer3: 3x3 maxpool (stride 1, pad 1) + 1x1 conv ---------------
        ninf = float("-inf")
        pooled = x
        for dh in (-1, 0, 1):
            for dw in (-1, 0, 1):
                if dh == 0 and dw == 0:
                    continue
                sh = _shift(x, dh * W + dw, ninf)
                if dw == -1:
                    sh = jnp.where(not_first_col, sh, ninf)
                elif dw == 1:
                    sh = jnp.where(not_last_col, sh, ninf)
                pooled = jnp.maximum(pooled, sh)
        y3 = jnp.dot(l3w_ref[...], pooled, preferred_element_type=jnp.float32)
        y3 = jnp.maximum(y3 * l3s_ref[...] + l3b_ref[...], 0.0)

        # ---- concat along channels, lane-dense store ------------------------
        out_ref[0] = jnp.concatenate([y1, y2, y3, y4], axis=0)

    return kernel


# ----------------------------------------------------------------------------
# Parameter packing: HWIO conv weights -> (Cout, K) matmul matrices matching
# the in-kernel tap stacking; BN folded into per-channel scale/bias (Cout, 1).
# ----------------------------------------------------------------------------
def _fold_w(p):
    kh, kw, cin, cout = p["w"].shape
    return p["w"].reshape(kh * kw * cin, cout).T          # (cout, kh*kw*cin)


def pack_inception_params(params):
    l1, l2, l3, l4 = (params["layer1"], params["layer2"],
                      params["layer3"], params["layer4"])
    cout = l4[0]["w"].shape[-1]

    head_w = jnp.concatenate([_fold_w(l1[0]), _fold_w(l2[0]), _fold_w(l4[0])], 0)
    head_s = jnp.concatenate([l1[0]["scale"], l2[0]["scale"], l4[0]["scale"]], 0)
    head_b = jnp.concatenate([l1[0]["bias"], l2[0]["bias"], l4[0]["bias"]], 0)

    chain = [l1[1], l1[2], l1[3], l1[4], l2[1], l2[2]]
    chain_w = jnp.stack([_fold_w(p) for p in chain], 0)        # (6, cout, 3*cout)
    chain_s = jnp.stack([p["scale"] for p in chain], 0)        # (6, cout)
    chain_b = jnp.stack([p["bias"] for p in chain], 0)

    return dict(
        head_w=head_w,                                         # (3*cout, cin)
        head_s=head_s.reshape(3 * cout, 1),
        head_b=head_b.reshape(3 * cout, 1),
        l3_w=_fold_w(l3[0]),                                   # (cout, cin)
        l3_s=l3[0]["scale"].reshape(cout, 1),
        l3_b=l3[0]["bias"].reshape(cout, 1),
        chain_w=chain_w,
        chain_s=chain_s.reshape(6, cout, 1),
        chain_b=chain_b.reshape(6, cout, 1),
    )


# ----------------------------------------------------------------------------
# Wrapper: NCHW in / NCHW out, single pallas_call over the batch.
# ----------------------------------------------------------------------------
def inception_cell_b(x_nchw, params):
    N, cin, H, W = x_nchw.shape
    HW = H * W
    pk = pack_inception_params(params)
    cout = pk["l3_w"].shape[0]

    x_flat = x_nchw.reshape(N, cin, HW)        # contiguous reshape, no transpose

    def _full_spec(a):
        nd = a.ndim
        return pl.BlockSpec(a.shape, lambda n: (0,) * nd)

    args = (x_flat, pk["head_w"], pk["head_s"], pk["head_b"],
            pk["l3_w"], pk["l3_s"], pk["l3_b"],
            pk["chain_w"], pk["chain_s"], pk["chain_b"])
    in_specs = [pl.BlockSpec((1, cin, HW), lambda n: (n, 0, 0))]
    in_specs += [_full_spec(a) for a in args[1:]]

    out_flat = pl.pallas_call(
        _make_inception_kernel(H, W),
        out_shape=jax.ShapeDtypeStruct((N, 4 * cout, HW), jnp.float32),
        grid=(N,),
        in_specs=in_specs,
        out_specs=pl.BlockSpec((1, 4 * cout, HW), lambda n: (n, 0, 0)),
        compiler_params=pltpu.CompilerParams(dimension_semantics=("parallel",)),
    )(*args)

    return out_flat.reshape(N, 4 * cout, H, W)  # already NCHW channel order


# ----------------------------------------------------------------------------
# Parameter construction (deterministic, PyTorch-like init, BN folded, eval mode)
# ----------------------------------------------------------------------------
def make_simpleconv_params(key, cin, cout, kh, kw):
    k1, k2, k3, k4, k5, k6 = jax.random.split(key, 6)
    bound = 1.0 / math.sqrt(cin * kh * kw)
    w = jax.random.uniform(k1, (kh, kw, cin, cout), jnp.float32, -bound, bound)
    conv_b = jax.random.uniform(k2, (cout,), jnp.float32, -bound, bound)
    gamma = jax.random.uniform(k3, (cout,), jnp.float32, 0.5, 1.5)
    beta = jax.random.uniform(k4, (cout,), jnp.float32, -0.5, 0.5)
    run_mean = jax.random.uniform(k5, (cout,), jnp.float32, -0.5, 0.5)
    run_var = jax.random.uniform(k6, (cout,), jnp.float32, 0.5, 1.5)
    scale = gamma / jnp.sqrt(run_var + 1e-5)
    bias = (conv_b - run_mean) * scale + beta
    return dict(w=w, scale=scale, bias=bias)


def make_inception_b_params(key, input_dim, output_dim):
    keys = jax.random.split(key, 10)
    layer1 = [
        make_simpleconv_params(keys[0], input_dim, output_dim, 1, 1),
        make_simpleconv_params(keys[1], output_dim, output_dim, 3, 1),
        make_simpleconv_params(keys[2], output_dim, output_dim, 1, 3),
        make_simpleconv_params(keys[3], output_dim, output_dim, 3, 1),
        make_simpleconv_params(keys[4], output_dim, output_dim, 1, 3),
    ]
    layer2 = [
        make_simpleconv_params(keys[5], input_dim, output_dim, 1, 1),
        make_simpleconv_params(keys[6], output_dim, output_dim, 3, 1),
        make_simpleconv_params(keys[7], output_dim, output_dim, 1, 3),
    ]
    layer3 = [make_simpleconv_params(keys[8], input_dim, output_dim, 1, 1)]
    layer4 = [make_simpleconv_params(keys[9], input_dim, output_dim, 1, 1)]
    return dict(layer1=layer1, layer2=layer2, layer3=layer3, layer4=layer4)


# ----------------------------------------------------------------------------
# Pure-JAX reference (canonical conv / reduce_window formulation)
# ----------------------------------------------------------------------------
def _ref_conv_bn_relu(x, p):
    kh, kw = p["w"].shape[0], p["w"].shape[1]
    ph, pw = (kh - 1) // 2, (kw - 1) // 2
    y = jax.lax.conv_general_dilated(
        x, p["w"], window_strides=(1, 1),
        padding=[(ph, kh - 1 - ph), (pw, kw - 1 - pw)],
        dimension_numbers=("NHWC", "HWIO", "NHWC"))
    y = y * p["scale"] + p["bias"]
    return jnp.maximum(y, 0.0)


def inception_cell_b_reference(x_nchw, params):
    x = jnp.transpose(x_nchw, (0, 2, 3, 1))
    y1 = x
    for p in params["layer1"]:
        y1 = _ref_conv_bn_relu(y1, p)
    y2 = x
    for p in params["layer2"]:
        y2 = _ref_conv_bn_relu(y2, p)
    y3 = jax.lax.reduce_window(
        x, -jnp.inf, jax.lax.max, (1, 3, 3, 1), (1, 1, 1, 1),
        [(0, 0), (1, 1), (1, 1), (0, 0)])
    y3 = _ref_conv_bn_relu(y3, params["layer3"][0])
    y4 = _ref_conv_bn_relu(x, params["layer4"][0])
    out = jnp.concatenate([y1, y2, y3, y4], axis=-1)
    return jnp.transpose(out, (0, 3, 1, 2))


# ----------------------------------------------------------------------------
if __name__ == "__main__":
    key = jax.random.PRNGKey(0)
    k_x, k_p = jax.random.split(key)

    batch, input_dim, output_dim, H, W = 2, 4, 8, 16, 16
    x = jax.random.normal(k_x, (batch, input_dim, H, W), jnp.float32)  # NCHW
    params = make_inception_b_params(k_p, input_dim, output_dim)

    fwd = jax.jit(inception_cell_b)
    out = jax.block_until_ready(fwd(x, params))
    assert out.shape == (batch, 4 * output_dim, H, W), out.shape

    ref = jax.block_until_ready(inception_cell_b_reference(x, params))
    # Default (non-HIGHEST) MXU precision in the kernel vs. XLA's conv path:
    # tolerance relaxed accordingly; real bugs (wrong tap/shift/mask) produce O(1) errors.
    np.testing.assert_allclose(np.asarray(out), np.asarray(ref),
                               rtol=5e-2, atol=5e-2)

    print("KERNEL_OK")
</pallas_src>

<mosaic_0001>
module attributes {stable_mosaic.version = 11 : i64} {
  func.func @kernel(%arg0: i32, %arg1: memref<1x4x256xf32, #tpu.memory_space<vmem>>, %arg2: memref<24x4xf32, #tpu.memory_space<vmem>>, %arg3: memref<24x1xf32, #tpu.memory_space<vmem>>, %arg4: memref<24x1xf32, #tpu.memory_space<vmem>>, %arg5: memref<8x4xf32, #tpu.memory_space<vmem>>, %arg6: memref<8x1xf32, #tpu.memory_space<vmem>>, %arg7: memref<8x1xf32, #tpu.memory_space<vmem>>, %arg8: memref<6x8x24xf32, #tpu.memory_space<vmem>>, %arg9: memref<6x8x1xf32, #tpu.memory_space<vmem>>, %arg10: memref<6x8x1xf32, #tpu.memory_space<vmem>>, %arg11: memref<1x32x256xf32, #tpu.memory_space<vmem>>) attributes {dimension_semantics = [#tpu.dimension_semantics<parallel>], iteration_bounds = array<i64: 2>, scalar_prefetch = 0 : i64, scratch_operands = 0 : i64, tpu.core_type = #tpu.core_type<tc>, window_params = [{transform_indices = @transform_0, window_bounds = array<i64: 1, 4, 256>}, {pipeline_mode = #tpu.pipeline_mode<synchronous>, transform_indices = @transform_1, window_bounds = array<i64: 24, 4>}, {pipeline_mode = #tpu.pipeline_mode<synchronous>, transform_indices = @transform_2, window_bounds = array<i64: 24, 1>}, {pipeline_mode = #tpu.pipeline_mode<synchronous>, transform_indices = @transform_3, window_bounds = array<i64: 24, 1>}, {pipeline_mode = #tpu.pipeline_mode<synchronous>, transform_indices = @transform_4, window_bounds = array<i64: 8, 4>}, {pipeline_mode = #tpu.pipeline_mode<synchronous>, transform_indices = @transform_5, window_bounds = array<i64: 8, 1>}, {pipeline_mode = #tpu.pipeline_mode<synchronous>, transform_indices = @transform_6, window_bounds = array<i64: 8, 1>}, {pipeline_mode = #tpu.pipeline_mode<synchronous>, transform_indices = @transform_7, window_bounds = array<i64: 6, 8, 24>}, {pipeline_mode = #tpu.pipeline_mode<synchronous>, transform_indices = @transform_8, window_bounds = array<i64: 6, 8, 1>}, {pipeline_mode = #tpu.pipeline_mode<synchronous>, transform_indices = @transform_9, window_bounds = array<i64: 6, 8, 1>}, {transform_indices = @transform_10, window_bounds = array<i64: 1, 32, 256>}]} {
    %c0 = arith.constant 0 : index
    %c0_0 = arith.constant 0 : index
    %c0_1 = arith.constant 0 : index
    %0 = vector.load %arg1[%c0, %c0_0, %c0_1] : memref<1x4x256xf32, #tpu.memory_space<vmem>>, vector<1x4x256xf32>
    %1 = vector.shape_cast %0 : vector<1x4x256xf32> to vector<4x256xf32>
    %2 = tpu.iota {dimensions = array<i32: 1>} : vector<1x256xi32>
    %c16_i32 = arith.constant 16 : i32
    %c0_i32 = arith.constant 0 : i32
    %3 = arith.cmpi eq, %c16_i32, %c0_i32 : i32
    %c1_i32 = arith.constant 1 : i32
    %4 = arith.select %3, %c1_i32, %c16_i32 : i32
    %5 = vector.broadcast %4 : i32 to vector<1x256xi32>
    %6 = arith.remsi %2, %5 : vector<1x256xi32>
    %c0_i32_2 = arith.constant 0 : i32
    %7 = vector.broadcast %c0_i32_2 : i32 to vector<1x256xi32>
    %8 = arith.cmpi ne, %6, %7 : vector<1x256xi32>
    %c0_i32_3 = arith.constant 0 : i32
    %9 = vector.broadcast %c0_i32_3 : i32 to vector<1x256xi32>
    %10 = arith.cmpi slt, %6, %9 : vector<1x256xi32>
    %c0_i32_4 = arith.constant 0 : i32
    %11 = arith.cmpi slt, %4, %c0_i32_4 : i32
    %12 = vector.broadcast %11 : i1 to vector<1x256xi1>
    %13 = vector.broadcast %12 : vector<1x256xi1> to vector<1x256xi1>
    %14 = arith.xori %10, %13 : vector<1x256xi1>
    %15 = arith.andi %14, %8 : vector<1x256xi1>
    %16 = vector.broadcast %4 : i32 to vector<1x256xi32>
    %17 = arith.addi %6, %16 : vector<1x256xi32>
    %18 = arith.select %15, %17, %6 : vector<1x256xi1>, vector<1x256xi32>
    %c1_i32_5 = arith.constant 1 : i32
    %19 = vector.broadcast %c1_i32_5 : i32 to vector<1x256xi32>
    %20 = arith.cmpi sge, %18, %19 : vector<1x256xi32>
    %c14_i32 = arith.constant 14 : i32
    %21 = vector.broadcast %c14_i32 : i32 to vector<1x256xi32>
    %22 = arith.cmpi sle, %18, %21 : vector<1x256xi32>
    %c0_6 = arith.constant 0 : index
    %c0_7 = arith.constant 0 : index
    %23 = vector.load %arg2[%c0_6, %c0_7] : memref<24x4xf32, #tpu.memory_space<vmem>>, vector<24x4xf32>
    %cst = arith.constant dense<0.000000e+00> : vector<24x256xf32>
    %24 = tpu.matmul %23, %1, %cst {dimension_numbers = #tpu.dot_dimension_numbers<[1], [0], [0], [1], [0, 0, 1, 1], [], []>} : vector<24x4xf32>, vector<4x256xf32>, vector<24x256xf32> -> vector<24x256xf32>
    %c0_8 = arith.constant 0 : index
    %c0_9 = arith.constant 0 : index
    %25 = vector.load %arg3[%c0_8, %c0_9] : memref<24x1xf32, #tpu.memory_space<vmem>>, vector<24x1xf32>
    %26 = vector.broadcast %25 : vector<24x1xf32> to vector<24x256xf32>
    %27 = arith.mulf %24, %26 : vector<24x256xf32>
    %c0_10 = arith.constant 0 : index
    %c0_11 = arith.constant 0 : index
    %28 = vector.load %arg4[%c0_10, %c0_11] : memref<24x1xf32, #tpu.memory_space<vmem>>, vector<24x1xf32>
    %29 = vector.broadcast %28 : vector<24x1xf32> to vector<24x256xf32>
    %30 = arith.addf %27, %29 : vector<24x256xf32>
    %cst_12 = arith.constant 0.000000e+00 : f32
    %31 = vector.broadcast %cst_12 : f32 to vector<24x256xf32>
    %32 = arith.maximumf %30, %31 : vector<24x256xf32>
    %33 = vector.extract_strided_slice %32 {offsets = [0, 0], sizes = [8, 256], strides = [1, 1]} : vector<24x256xf32> to vector<8x256xf32>
    %34 = vector.extract_strided_slice %32 {offsets = [8, 0], sizes = [8, 256], strides = [1, 1]} : vector<24x256xf32> to vector<8x256xf32>
    %35 = vector.extract_strided_slice %32 {offsets = [16, 0], sizes = [8, 256], strides = [1, 1]} : vector<24x256xf32> to vector<8x256xf32>
    %c0_13 = arith.constant 0 : index
    %c0_14 = arith.constant 0 : index
    %c0_15 = arith.constant 0 : index
    %36 = vector.load %arg8[%c0_13, %c0_14, %c0_15] : memref<6x8x24xf32, #tpu.memory_space<vmem>>, vector<1x8x24xf32>
    %37 = vector.shape_cast %36 : vector<1x8x24xf32> to vector<8x24xf32>
    %c0_16 = arith.constant 0 : index
    %c0_17 = arith.constant 0 : index
    %c0_18 = arith.constant 0 : index
    %38 = vector.load %arg9[%c0_16, %c0_17, %c0_18] : memref<6x8x1xf32, #tpu.memory_space<vmem>>, vector<1x8x1xf32>
    %39 = vector.shape_cast %38 : vector<1x8x1xf32> to vector<8x1xf32>
    %c0_19 = arith.constant 0 : index
    %c0_20 = arith.constant 0 : index
    %c0_21 = arith.constant 0 : index
    %40 = vector.load %arg10[%c0_19, %c0_20, %c0_21] : memref<6x8x1xf32, #tpu.memory_space<vmem>>, vector<1x8x1xf32>
    %41 = vector.shape_cast %40 : vector<1x8x1xf32> to vector<8x1xf32>
    %cst_22 = arith.constant 0.000000e+00 : f32
    %42 = vector.broadcast %cst_22 : f32 to vector<8x16xf32>
    %43 = vector.extract_strided_slice %33 {offsets = [0, 0], sizes = [8, 240], strides = [1, 1]} : vector<8x256xf32> to vector<8x240xf32>
    %44 = tpu.concatenate %42, %43 in 1 : vector<8x16xf32>, vector<8x240xf32> -> vector<8x256xf32>
    %cst_23 = arith.constant 0.000000e+00 : f32
    %45 = vector.broadcast %cst_23 : f32 to vector<8x16xf32>
    %46 = vector.extract_strided_slice %33 {offsets = [0, 16], sizes = [8, 240], strides = [1, 1]} : vector<8x256xf32> to vector<8x240xf32>
    %47 = tpu.concatenate %46, %45 in 1 : vector<8x240xf32>, vector<8x16xf32> -> vector<8x256xf32>
    %48 = tpu.concatenate %44, %33, %47 in 0 : vector<8x256xf32>, vector<8x256xf32>, vector<8x256xf32> -> vector<24x256xf32>
    %cst_24 = arith.constant dense<0.000000e+00> : vector<8x256xf32>
    %49 = tpu.matmul %37, %48, %cst_24 {dimension_numbers = #tpu.dot_dimension_numbers<[1], [0], [0], [1], [0, 0, 1, 1], [], []>} : vector<8x24xf32>, vector<24x256xf32>, vector<8x256xf32> -> vector<8x256xf32>
    %50 = vector.broadcast %39 : vector<8x1xf32> to vector<8x256xf32>
    %51 = arith.mulf %49, %50 : vector<8x256xf32>
    %52 = vector.broadcast %41 : vector<8x1xf32> to vector<8x256xf32>
    %53 = arith.addf %51, %52 : vector<8x256xf32>
    %cst_25 = arith.constant 0.000000e+00 : f32
    %54 = vector.broadcast %cst_25 : f32 to vector<8x256xf32>
    %55 = arith.maximumf %53, %54 : vector<8x256xf32>
    %c1 = arith.constant 1 : index
    %c0_26 = arith.constant 0 : index
    %c0_27 = arith.constant 0 : index
    %56 = vector.load %arg8[%c1, %c0_26, %c0_27] : memref<6x8x24xf32, #tpu.memory_space<vmem>>, vector<1x8x24xf32>
    %57 = vector.shape_cast %56 : vector<1x8x24xf32> to vector<8x24xf32>
    %c1_28 = arith.constant 1 : index
    %c0_29 = arith.constant 0 : index
    %c0_30 = arith.constant 0 : index
    %58 = vector.load %arg9[%c1_28, %c0_29, %c0_30] : memref<6x8x1xf32, #tpu.memory_space<vmem>>, vector<1x8x1xf32>
    %59 = vector.shape_cast %58 : vector<1x8x1xf32> to vector<8x1xf32>
    %c1_31 = arith.constant 1 : index
    %c0_32 = arith.constant 0 : index
    %c0_33 = arith.constant 0 : index
    %60 = vector.load %arg10[%c1_31, %c0_32, %c0_33] : memref<6x8x1xf32, #tpu.memory_space<vmem>>, vector<1x8x1xf32>
    %61 = vector.shape_cast %60 : vector<1x8x1xf32> to vector<8x1xf32>
    %cst_34 = arith.constant 0.000000e+00 : f32
    %62 = vector.broadcast %cst_34 : f32 to vector<8x1xf32>
    %63 = vector.extract_strided_slice %55 {offsets = [0, 0], sizes = [8, 255], strides = [1, 1]} : vector<8x256xf32> to vector<8x255xf32>
    %64 = tpu.concatenate %62, %63 in 1 : vector<8x1xf32>, vector<8x255xf32> -> vector<8x256xf32>
    %cst_35 = arith.constant 0.000000e+00 : f32
    %65 = vector.shape_cast %20 : vector<1x256xi1> to vector<1x256xi1>
    %66 = vector.broadcast %65 : vector<1x256xi1> to vector<8x256xi1>
    %67 = vector.broadcast %cst_35 : f32 to vector<8x256xf32>
    %68 = arith.select %66, %64, %67 : vector<8x256xi1>, vector<8x256xf32>
    %cst_36 = arith.constant 0.000000e+00 : f32
    %69 = vector.broadcast %cst_36 : f32 to vector<8x1xf32>
    %70 = vector.extract_strided_slice %55 {offsets = [0, 1], sizes = [8, 255], strides = [1, 1]} : vector<8x256xf32> to vector<8x255xf32>
    %71 = tpu.concatenate %70, %69 in 1 : vector<8x255xf32>, vector<8x1xf32> -> vector<8x256xf32>
    %cst_37 = arith.constant 0.000000e+00 : f32
    %72 = vector.shape_cast %22 : vector<1x256xi1> to vector<1x256xi1>
    %73 = vector.broadcast %72 : vector<1x256xi1> to vector<8x256xi1>
    %74 = vector.broadcast %cst_37 : f32 to vector<8x256xf32>
    %75 = arith.select %73, %71, %74 : vector<8x256xi1>, vector<8x256xf32>
    %76 = tpu.concatenate %68, %55, %75 in 0 : vector<8x256xf32>, vector<8x256xf32>, vector<8x256xf32> -> vector<24x256xf32>
    %cst_38 = arith.constant dense<0.000000e+00> : vector<8x256xf32>
    %77 = tpu.matmul %57, %76, %cst_38 {dimension_numbers = #tpu.dot_dimension_numbers<[1], [0], [0], [1], [0, 0, 1, 1], [], []>} : vector<8x24xf32>, vector<24x256xf32>, vector<8x256xf32> -> vector<8x256xf32>
    %78 = vector.broadcast %59 : vector<8x1xf32> to vector<8x256xf32>
    %79 = arith.mulf %77, %78 : vector<8x256xf32>
    %80 = vector.broadcast %61 : vector<8x1xf32> to vector<8x256xf32>
    %81 = arith.addf %79, %80 : vector<8x256xf32>
    %cst_39 = arith.constant 0.000000e+00 : f32
    %82 = vector.broadcast %cst_39 : f32 to vector<8x256xf32>
    %83 = arith.maximumf %81, %82 : vector<8x256xf32>
    %c2 = arith.constant 2 : index
    %c0_40 = arith.constant 0 : index
    %c0_41 = arith.constant 0 : index
    %84 = vector.load %arg8[%c2, %c0_40, %c0_41] : memref<6x8x24xf32, #tpu.memory_space<vmem>>, vector<1x8x24xf32>
    %85 = vector.shape_cast %84 : vector<1x8x24xf32> to vector<8x24xf32>
    %c2_42 = arith.constant 2 : index
    %c0_43 = arith.constant 0 : index
    %c0_44 = arith.constant 0 : index
    %86 = vector.load %arg9[%c2_42, %c0_43, %c0_44] : memref<6x8x1xf32, #tpu.memory_space<vmem>>, vector<1x8x1xf32>
    %87 = vector.shape_cast %86 : vector<1x8x1xf32> to vector<8x1xf32>
    %c2_45 = arith.constant 2 : index
    %c0_46 = arith.constant 0 : index
    %c0_47 = arith.constant 0 : index
    %88 = vector.load %arg10[%c2_45, %c0_46, %c0_47] : memref<6x8x1xf32, #tpu.memory_space<vmem>>, vector<1x8x1xf32>
    %89 = vector.shape_cast %88 : vector<1x8x1xf32> to vector<8x1xf32>
    %cst_48 = arith.constant 0.000000e+00 : f32
    %90 = vector.broadcast %cst_48 : f32 to vector<8x16xf32>
    %91 = vector.extract_strided_slice %83 {offsets = [0, 0], sizes = [8, 240], strides = [1, 1]} : vector<8x256xf32> to vector<8x240xf32>
    %92 = tpu.concatenate %90, %91 in 1 : vector<8x16xf32>, vector<8x240xf32> -> vector<8x256xf32>
    %cst_49 = arith.constant 0.000000e+00 : f32
    %93 = vector.broadcast %cst_49 : f32 to vector<8x16xf32>
    %94 = vector.extract_strided_slice %83 {offsets = [0, 16], sizes = [8, 240], strides = [1, 1]} : vector<8x256xf32> to vector<8x240xf32>
    %95 = tpu.concatenate %94, %93 in 1 : vector<8x240xf32>, vector<8x16xf32> -> vector<8x256xf32>
    %96 = tpu.concatenate %92, %83, %95 in 0 : vector<8x256xf32>, vector<8x256xf32>, vector<8x256xf32> -> vector<24x256xf32>
    %cst_50 = arith.constant dense<0.000000e+00> : vector<8x256xf32>
    %97 = tpu.matmul %85, %96, %cst_50 {dimension_numbers = #tpu.dot_dimension_numbers<[1], [0], [0], [1], [0, 0, 1, 1], [], []>} : vector<8x24xf32>, vector<24x256xf32>, vector<8x256xf32> -> vector<8x256xf32>
    %98 = vector.broadcast %87 : vector<8x1xf32> to vector<8x256xf32>
    %99 = arith.mulf %97, %98 : vector<8x256xf32>
    %100 = vector.broadcast %89 : vector<8x1xf32> to vector<8x256xf32>
    %101 = arith.addf %99, %100 : vector<8x256xf32>
    %cst_51 = arith.constant 0.000000e+00 : f32
    %102 = vector.broadcast %cst_51 : f32 to vector<8x256xf32>
    %103 = arith.maximumf %101, %102 : vector<8x256xf32>
    %c3 = arith.constant 3 : index
    %c0_52 = arith.constant 0 : index
    %c0_53 = arith.constant 0 : index
    %104 = vector.load %arg8[%c3, %c0_52, %c0_53] : memref<6x8x24xf32, #tpu.memory_space<vmem>>, vector<1x8x24xf32>
    %105 = vector.shape_cast %104 : vector<1x8x24xf32> to vector<8x24xf32>
    %c3_54 = arith.constant 3 : index
    %c0_55 = arith.constant 0 : index
    %c0_56 = arith.constant 0 : index
    %106 = vector.load %arg9[%c3_54, %c0_55, %c0_56] : memref<6x8x1xf32, #tpu.memory_space<vmem>>, vector<1x8x1xf32>
    %107 = vector.shape_cast %106 : vector<1x8x1xf32> to vector<8x1xf32>
    %c3_57 = arith.constant 3 : index
    %c0_58 = arith.constant 0 : index
    %c0_59 = arith.constant 0 : index
    %108 = vector.load %arg10[%c3_57, %c0_58, %c0_59] : memref<6x8x1xf32, #tpu.memory_space<vmem>>, vector<1x8x1xf32>
    %109 = vector.shape_cast %108 : vector<1x8x1xf32> to vector<8x1xf32>
    %cst_60 = arith.constant 0.000000e+00 : f32
    %110 = vector.broadcast %cst_60 : f32 to vector<8x1xf32>
    %111 = vector.extract_strided_slice %103 {offsets = [0, 0], sizes = [8, 255], strides = [1, 1]} : vector<8x256xf32> to vector<8x255xf32>
    %112 = tpu.concatenate %110, %111 in 1 : vector<8x1xf32>, vector<8x255xf32> -> vector<8x256xf32>
    %cst_61 = arith.constant 0.000000e+00 : f32
    %113 = vector.shape_cast %20 : vector<1x256xi1> to vector<1x256xi1>
    %114 = vector.broadcast %113 : vector<1x256xi1> to vector<8x256xi1>
    %115 = vector.broadcast %cst_61 : f32 to vector<8x256xf32>
    %116 = arith.select %114, %112, %115 : vector<8x256xi1>, vector<8x256xf32>
    %cst_62 = arith.constant 0.000000e+00 : f32
    %117 = vector.broadcast %cst_62 : f32 to vector<8x1xf32>
    %118 = vector.extract_strided_slice %103 {offsets = [0, 1], sizes = [8, 255], strides = [1, 1]} : vector<8x256xf32> to vector<8x255xf32>
    %119 = tpu.concatenate %118, %117 in 1 : vector<8x255xf32>, vector<8x1xf32> -> vector<8x256xf32>
    %cst_63 = arith.constant 0.000000e+00 : f32
    %120 = vector.shape_cast %22 : vector<1x256xi1> to vector<1x256xi1>
    %121 = vector.broadcast %120 : vector<1x256xi1> to vector<8x256xi1>
    %122 = vector.broadcast %cst_63 : f32 to vector<8x256xf32>
    %123 = arith.select %121, %119, %122 : vector<8x256xi1>, vector<8x256xf32>
    %124 = tpu.concatenate %116, %103, %123 in 0 : vector<8x256xf32>, vector<8x256xf32>, vector<8x256xf32> -> vector<24x256xf32>
    %cst_64 = arith.constant dense<0.000000e+00> : vector<8x256xf32>
    %125 = tpu.matmul %105, %124, %cst_64 {dimension_numbers = #tpu.dot_dimension_numbers<[1], [0], [0], [1], [0, 0, 1, 1], [], []>} : vector<8x24xf32>, vector<24x256xf32>, vector<8x256xf32> -> vector<8x256xf32>
    %126 = vector.broadcast %107 : vector<8x1xf32> to vector<8x256xf32>
    %127 = arith.mulf %125, %126 : vector<8x256xf32>
    %128 = vector.broadcast %109 : vector<8x1xf32> to vector<8x256xf32>
    %129 = arith.addf %127, %128 : vector<8x256xf32>
    %cst_65 = arith.constant 0.000000e+00 : f32
    %130 = vector.broadcast %cst_65 : f32 to vector<8x256xf32>
    %131 = arith.maximumf %129, %130 : vector<8x256xf32>
    %c4 = arith.constant 4 : index
    %c0_66 = arith.constant 0 : index
    %c0_67 = arith.constant 0 : index
    %132 = vector.load %arg8[%c4, %c0_66, %c0_67] : memref<6x8x24xf32, #tpu.memory_space<vmem>>, vector<1x8x24xf32>
    %133 = vector.shape_cast %132 : vector<1x8x24xf32> to vector<8x24xf32>
    %c4_68 = arith.constant 4 : index
    %c0_69 = arith.constant 0 : index
    %c0_70 = arith.constant 0 : index
    %134 = vector.load %arg9[%c4_68, %c0_69, %c0_70] : memref<6x8x1xf32, #tpu.memory_space<vmem>>, vector<1x8x1xf32>
    %135 = vector.shape_cast %134 : vector<1x8x1xf32> to vector<8x1xf32>
    %c4_71 = arith.constant 4 : index
    %c0_72 = arith.constant 0 : index
    %c0_73 = arith.constant 0 : index
    %136 = vector.load %arg10[%c4_71, %c0_72, %c0_73] : memref<6x8x1xf32, #tpu.memory_space<vmem>>, vector<1x8x1xf32>
    %137 = vector.shape_cast %136 : vector<1x8x1xf32> to vector<8x1xf32>
    %cst_74 = arith.constant 0.000000e+00 : f32
    %138 = vector.broadcast %cst_74 : f32 to vector<8x16xf32>
    %139 = vector.extract_strided_slice %34 {offsets = [0, 0], sizes = [8, 240], strides = [1, 1]} : vector<8x256xf32> to vector<8x240xf32>
    %140 = tpu.concatenate %138, %139 in 1 : vector<8x16xf32>, vector<8x240xf32> -> vector<8x256xf32>
    %cst_75 = arith.constant 0.000000e+00 : f32
    %141 = vector.broadcast %cst_75 : f32 to vector<8x16xf32>
    %142 = vector.extract_strided_slice %34 {offsets = [0, 16], sizes = [8, 240], strides = [1, 1]} : vector<8x256xf32> to vector<8x240xf32>
    %143 = tpu.concatenate %142, %141 in 1 : vector<8x240xf32>, vector<8x16xf32> -> vector<8x256xf32>
    %144 = tpu.concatenate %140, %34, %143 in 0 : vector<8x256xf32>, vector<8x256xf32>, vector<8x256xf32> -> vector<24x256xf32>
    %cst_76 = arith.constant dense<0.000000e+00> : vector<8x256xf32>
    %145 = tpu.matmul %133, %144, %cst_76 {dimension_numbers = #tpu.dot_dimension_numbers<[1], [0], [0], [1], [0, 0, 1, 1], [], []>} : vector<8x24xf32>, vector<24x256xf32>, vector<8x256xf32> -> vector<8x256xf32>
    %146 = vector.broadcast %135 : vector<8x1xf32> to vector<8x256xf32>
    %147 = arith.mulf %145, %146 : vector<8x256xf32>
    %148 = vector.broadcast %137 : vector<8x1xf32> to vector<8x256xf32>
    %149 = arith.addf %147, %148 : vector<8x256xf32>
    %cst_77 = arith.constant 0.000000e+00 : f32
    %150 = vector.broadcast %cst_77 : f32 to vector<8x256xf32>
    %151 = arith.maximumf %149, %150 : vector<8x256xf32>
    %c5 = arith.constant 5 : index
    %c0_78 = arith.constant 0 : index
    %c0_79 = arith.constant 0 : index
    %152 = vector.load %arg8[%c5, %c0_78, %c0_79] : memref<6x8x24xf32, #tpu.memory_space<vmem>>, vector<1x8x24xf32>
    %153 = vector.shape_cast %152 : vector<1x8x24xf32> to vector<8x24xf32>
    %c5_80 = arith.constant 5 : index
    %c0_81 = arith.constant 0 : index
    %c0_82 = arith.constant 0 : index
    %154 = vector.load %arg9[%c5_80, %c0_81, %c0_82] : memref<6x8x1xf32, #tpu.memory_space<vmem>>, vector<1x8x1xf32>
    %155 = vector.shape_cast %154 : vector<1x8x1xf32> to vector<8x1xf32>
    %c5_83 = arith.constant 5 : index
    %c0_84 = arith.constant 0 : index
    %c0_85 = arith.constant 0 : index
    %156 = vector.load %arg10[%c5_83, %c0_84, %c0_85] : memref<6x8x1xf32, #tpu.memory_space<vmem>>, vector<1x8x1xf32>
    %157 = vector.shape_cast %156 : vector<1x8x1xf32> to vector<8x1xf32>
    %cst_86 = arith.constant 0.000000e+00 : f32
    %158 = vector.broadcast %cst_86 : f32 to vector<8x1xf32>
    %159 = vector.extract_strided_slice %151 {offsets = [0, 0], sizes = [8, 255], strides = [1, 1]} : vector<8x256xf32> to vector<8x255xf32>
    %160 = tpu.concatenate %158, %159 in 1 : vector<8x1xf32>, vector<8x255xf32> -> vector<8x256xf32>
    %cst_87 = arith.constant 0.000000e+00 : f32
    %161 = vector.shape_cast %20 : vector<1x256xi1> to vector<1x256xi1>
    %162 = vector.broadcast %161 : vector<1x256xi1> to vector<8x256xi1>
    %163 = vector.broadcast %cst_87 : f32 to vector<8x256xf32>
    %164 = arith.select %162, %160, %163 : vector<8x256xi1>, vector<8x256xf32>
    %cst_88 = arith.constant 0.000000e+00 : f32
    %165 = vector.broadcast %cst_88 : f32 to vector<8x1xf32>
    %166 = vector.extract_strided_slice %151 {offsets = [0, 1], sizes = [8, 255], strides = [1, 1]} : vector<8x256xf32> to vector<8x255xf32>
    %167 = tpu.concatenate %166, %165 in 1 : vector<8x255xf32>, vector<8x1xf32> -> vector<8x256xf32>
    %cst_89 = arith.constant 0.000000e+00 : f32
    %168 = vector.shape_cast %22 : vector<1x256xi1> to vector<1x256xi1>
    %169 = vector.broadcast %168 : vector<1x256xi1> to vector<8x256xi1>
    %170 = vector.broadcast %cst_89 : f32 to vector<8x256xf32>
    %171 = arith.select %169, %167, %170 : vector<8x256xi1>, vector<8x256xf32>
    %172 = tpu.concatenate %164, %151, %171 in 0 : vector<8x256xf32>, vector<8x256xf32>, vector<8x256xf32> -> vector<24x256xf32>
    %cst_90 = arith.constant dense<0.000000e+00> : vector<8x256xf32>
    %173 = tpu.matmul %153, %172, %cst_90 {dimension_numbers = #tpu.dot_dimension_numbers<[1], [0], [0], [1], [0, 0, 1, 1], [], []>} : vector<8x24xf32>, vector<24x256xf32>, vector<8x256xf32> -> vector<8x256xf32>
    %174 = vector.broadcast %155 : vector<8x1xf32> to vector<8x256xf32>
    %175 = arith.mulf %173, %174 : vector<8x256xf32>
    %176 = vector.broadcast %157 : vector<8x1xf32> to vector<8x256xf32>
    %177 = arith.addf %175, %176 : vector<8x256xf32>
    %cst_91 = arith.constant 0.000000e+00 : f32
    %178 = vector.broadcast %cst_91 : f32 to vector<8x256xf32>
    %179 = arith.maximumf %177, %178 : vector<8x256xf32>
    %cst_92 = arith.constant 0xFF800000 : f32
    %180 = vector.broadcast %cst_92 : f32 to vector<4x17xf32>
    %181 = vector.extract_strided_slice %1 {offsets = [0, 0], sizes = [4, 239], strides = [1, 1]} : vector<4x256xf32> to vector<4x239xf32>
    %182 = tpu.concatenate %180, %181 in 1 : vector<4x17xf32>, vector<4x239xf32> -> vector<4x256xf32>
    %cst_93 = arith.constant 0xFF800000 : f32
    %183 = vector.shape_cast %20 : vector<1x256xi1> to vector<1x256xi1>
    %184 = vector.broadcast %183 : vector<1x256xi1> to vector<4x256xi1>
    %185 = vector.broadcast %cst_93 : f32 to vector<4x256xf32>
    %186 = arith.select %184, %182, %185 : vector<4x256xi1>, vector<4x256xf32>
    %187 = arith.maximumf %1, %186 : vector<4x256xf32>
    %cst_94 = arith.constant 0xFF800000 : f32
    %188 = vector.broadcast %cst_94 : f32 to vector<4x16xf32>
    %189 = vector.extract_strided_slice %1 {offsets = [0, 0], sizes = [4, 240], strides = [1, 1]} : vector<4x256xf32> to vector<4x240xf32>
    %190 = tpu.concatenate %188, %189 in 1 : vector<4x16xf32>, vector<4x240xf32> -> vector<4x256xf32>
    %191 = arith.maximumf %187, %190 : vector<4x256xf32>
    %cst_95 = arith.constant 0xFF800000 : f32
    %192 = vector.broadcast %cst_95 : f32 to vector<4x15xf32>
    %193 = vector.extract_strided_slice %1 {offsets = [0, 0], sizes = [4, 241], strides = [1, 1]} : vector<4x256xf32> to vector<4x241xf32>
    %194 = tpu.concatenate %192, %193 in 1 : vector<4x15xf32>, vector<4x241xf32> -> vector<4x256xf32>
    %cst_96 = arith.constant 0xFF800000 : f32
    %195 = vector.shape_cast %22 : vector<1x256xi1> to vector<1x256xi1>
    %196 = vector.broadcast %195 : vector<1x256xi1> to vector<4x256xi1>
    %197 = vector.broadcast %cst_96 : f32 to vector<4x256xf32>
    %198 = arith.select %196, %194, %197 : vector<4x256xi1>, vector<4x256xf32>
    %199 = arith.maximumf %191, %198 : vector<4x256xf32>
    %cst_97 = arith.constant 0xFF800000 : f32
    %200 = vector.broadcast %cst_97 : f32 to vector<4x1xf32>
    %201 = vector.extract_strided_slice %1 {offsets = [0, 0], sizes = [4, 255], strides = [1, 1]} : vector<4x256xf32> to vector<4x255xf32>
    %202 = tpu.concatenate %200, %201 in 1 : vector<4x1xf32>, vector<4x255xf32> -> vector<4x256xf32>
    %cst_98 = arith.constant 0xFF800000 : f32
    %203 = vector.shape_cast %20 : vector<1x256xi1> to vector<1x256xi1>
    %204 = vector.broadcast %203 : vector<1x256xi1> to vector<4x256xi1>
    %205 = vector.broadcast %cst_98 : f32 to vector<4x256xf32>
    %206 = arith.select %204, %202, %205 : vector<4x256xi1>, vector<4x256xf32>
    %207 = arith.maximumf %199, %206 : vector<4x256xf32>
    %cst_99 = arith.constant 0xFF800000 : f32
    %208 = vector.broadcast %cst_99 : f32 to vector<4x1xf32>
    %209 = vector.extract_strided_slice %1 {offsets = [0, 1], sizes = [4, 255], strides = [1, 1]} : vector<4x256xf32> to vector<4x255xf32>
    %210 = tpu.concatenate %209, %208 in 1 : vector<4x255xf32>, vector<4x1xf32> -> vector<4x256xf32>
    %cst_100 = arith.constant 0xFF800000 : f32
    %211 = vector.shape_cast %22 : vector<1x256xi1> to vector<1x256xi1>
    %212 = vector.broadcast %211 : vector<1x256xi1> to vector<4x256xi1>
    %213 = vector.broadcast %cst_100 : f32 to vector<4x256xf32>
    %214 = arith.select %212, %210, %213 : vector<4x256xi1>, vector<4x256xf32>
    %215 = arith.maximumf %207, %214 : vector<4x256xf32>
    %cst_101 = arith.constant 0xFF800000 : f32
    %216 = vector.broadcast %cst_101 : f32 to vector<4x15xf32>
    %217 = vector.extract_strided_slice %1 {offsets = [0, 15], sizes = [4, 241], strides = [1, 1]} : vector<4x256xf32> to vector<4x241xf32>
    %218 = tpu.concatenate %217, %216 in 1 : vector<4x241xf32>, vector<4x15xf32> -> vector<4x256xf32>
    %cst_102 = arith.constant 0xFF800000 : f32
    %219 = vector.shape_cast %20 : vector<1x256xi1> to vector<1x256xi1>
    %220 = vector.broadcast %219 : vector<1x256xi1> to vector<4x256xi1>
    %221 = vector.broadcast %cst_102 : f32 to vector<4x256xf32>
    %222 = arith.select %220, %218, %221 : vector<4x256xi1>, vector<4x256xf32>
    %223 = arith.maximumf %215, %222 : vector<4x256xf32>
    %cst_103 = arith.constant 0xFF800000 : f32
    %224 = vector.broadcast %cst_103 : f32 to vector<4x16xf32>
    %225 = vector.extract_strided_slice %1 {offsets = [0, 16], sizes = [4, 240], strides = [1, 1]} : vector<4x256xf32> to vector<4x240xf32>
    %226 = tpu.concatenate %225, %224 in 1 : vector<4x240xf32>, vector<4x16xf32> -> vector<4x256xf32>
    %227 = arith.maximumf %223, %226 : vector<4x256xf32>
    %cst_104 = arith.constant 0xFF800000 : f32
    %228 = vector.broadcast %cst_104 : f32 to vector<4x17xf32>
    %229 = vector.extract_strided_slice %1 {offsets = [0, 17], sizes = [4, 239], strides = [1, 1]} : vector<4x256xf32> to vector<4x239xf32>
    %230 = tpu.concatenate %229, %228 in 1 : vector<4x239xf32>, vector<4x17xf32> -> vector<4x256xf32>
    %cst_105 = arith.constant 0xFF800000 : f32
    %231 = vector.shape_cast %22 : vector<1x256xi1> to vector<1x256xi1>
    %232 = vector.broadcast %231 : vector<1x256xi1> to vector<4x256xi1>
    %233 = vector.broadcast %cst_105 : f32 to vector<4x256xf32>
    %234 = arith.select %232, %230, %233 : vector<4x256xi1>, vector<4x256xf32>
    %235 = arith.maximumf %227, %234 : vector<4x256xf32>
    %c0_106 = arith.constant 0 : index
    %c0_107 = arith.constant 0 : index
    %236 = vector.load %arg5[%c0_106, %c0_107] : memref<8x4xf32, #tpu.memory_space<vmem>>, vector<8x4xf32>
    %cst_108 = arith.constant dense<0.000000e+00> : vector<8x256xf32>
    %237 = tpu.matmul %236, %235, %cst_108 {dimension_numbers = #tpu.dot_dimension_numbers<[1], [0], [0], [1], [0, 0, 1, 1], [], []>} : vector<8x4xf32>, vector<4x256xf32>, vector<8x256xf32> -> vector<8x256xf32>
    %c0_109 = arith.constant 0 : index
    %c0_110 = arith.constant 0 : index
    %238 = vector.load %arg6[%c0_109, %c0_110] : memref<8x1xf32, #tpu.memory_space<vmem>>, vector<8x1xf32>
    %239 = vector.broadcast %238 : vector<8x1xf32> to vector<8x256xf32>
    %240 = arith.mulf %237, %239 : vector<8x256xf32>
    %c0_111 = arith.constant 0 : index
    %c0_112 = arith.constant 0 : index
    %241 = vector.load %arg7[%c0_111, %c0_112] : memref<8x1xf32, #tpu.memory_space<vmem>>, vector<8x1xf32>
    %242 = vector.broadcast %241 : vector<8x1xf32> to vector<8x256xf32>
    %243 = arith.addf %240, %242 : vector<8x256xf32>
    %cst_113 = arith.constant 0.000000e+00 : f32
    %244 = vector.broadcast %cst_113 : f32 to vector<8x256xf32>
    %245 = arith.maximumf %243, %244 : vector<8x256xf32>
    %246 = tpu.concatenate %131, %179, %245, %35 in 0 : vector<8x256xf32>, vector<8x256xf32>, vector<8x256xf32>, vector<8x256xf32> -> vector<32x256xf32>
    %c0_114 = arith.constant 0 : index
    %c0_115 = arith.constant 0 : index
    %c0_116 = arith.constant 0 : index
    %247 = vector.load %arg11[%c0_114, %c0_115, %c0_116] : memref<1x32x256xf32, #tpu.memory_space<vmem>>, vector<1x32x256xf32>
    %248 = vector.shape_cast %247 : vector<1x32x256xf32> to vector<32x256xf32>
    %249 = vector.shape_cast %246 : vector<32x256xf32> to vector<1x32x256xf32>
    tpu.vector_store %arg11[%c0_114, %c0_115, %c0_116], %249 {strides = array<i32>} : memref<1x32x256xf32, #tpu.memory_space<vmem>>, vector<1x32x256xf32>,
    return
  }
  func.func @transform_0(%arg0: i32) -> (i32, i32, i32) {
    %c0_i32 = arith.constant 0 : i32
    %c0_i32_0 = arith.constant 0 : i32
    %c0_i32_1 = arith.constant 0 : i32
    return %arg0, %c0_i32, %c0_i32_0 : i32, i32, i32
  }
  func.func @transform_1(%arg0: i32) -> (i32, i32) {
    %c0_i32 = arith.constant 0 : i32
    %c0_i32_0 = arith.constant 0 : i32
    %c0_i32_1 = arith.constant 0 : i32
    return %c0_i32, %c0_i32_0 : i32, i32
  }
  func.func @transform_2(%arg0: i32) -> (i32, i32) {
    %c0_i32 = arith.constant 0 : i32
    %c0_i32_0 = arith.constant 0 : i32
    %c0_i32_1 = arith.constant 0 : i32
    return %c0_i32, %c0_i32_0 : i32, i32
  }
  func.func @transform_3(%arg0: i32) -> (i32, i32) {
    %c0_i32 = arith.constant 0 : i32
    %c0_i32_0 = arith.constant 0 : i32
    %c0_i32_1 = arith.constant 0 : i32
    return %c0_i32, %c0_i32_0 : i32, i32
  }
  func.func @transform_4(%arg0: i32) -> (i32, i32) {
    %c0_i32 = arith.constant 0 : i32
    %c0_i32_0 = arith.constant 0 : i32
    %c0_i32_1 = arith.constant 0 : i32
    return %c0_i32, %c0_i32_0 : i32, i32
  }
  func.func @transform_5(%arg0: i32) -> (i32, i32) {
    %c0_i32 = arith.constant 0 : i32
    %c0_i32_0 = arith.constant 0 : i32
    %c0_i32_1 = arith.constant 0 : i32
    return %c0_i32, %c0_i32_0 : i32, i32
  }
  func.func @transform_6(%arg0: i32) -> (i32, i32) {
    %c0_i32 = arith.constant 0 : i32
    %c0_i32_0 = arith.constant 0 : i32
    %c0_i32_1 = arith.constant 0 : i32
    return %c0_i32, %c0_i32_0 : i32, i32
  }
  func.func @transform_7(%arg0: i32) -> (i32, i32, i32) {
    %c0_i32 = arith.constant 0 : i32
    %c0_i32_0 = arith.constant 0 : i32
    %c0_i32_1 = arith.constant 0 : i32
    %c0_i32_2 = arith.constant 0 : i32
    return %c0_i32, %c0_i32_0, %c0_i32_1 : i32, i32, i32
  }
  func.func @transform_8(%arg0: i32) -> (i32, i32, i32) {
    %c0_i32 = arith.constant 0 : i32
    %c0_i32_0 = arith.constant 0 : i32
    %c0_i32_1 = arith.constant 0 : i32
    %c0_i32_2 = arith.constant 0 : i32
    return %c0_i32, %c0_i32_0, %c0_i32_1 : i32, i32, i32
  }
  func.func @transform_9(%arg0: i32) -> (i32, i32, i32) {
    %c0_i32 = arith.constant 0 : i32
    %c0_i32_0 = arith.constant 0 : i32
    %c0_i32_1 = arith.constant 0 : i32
    %c0_i32_2 = arith.constant 0 : i32
    return %c0_i32, %c0_i32_0, %c0_i32_1 : i32, i32, i32
  }
  func.func @transform_10(%arg0: i32) -> (i32, i32, i32) {
    %c0_i32 = arith.constant 0 : i32
    %c0_i32_0 = arith.constant 0 : i32
    %c0_i32_1 = arith.constant 0 : i32
    return %arg0, %c0_i32, %c0_i32_0 : i32, i32, i32
  }
}

</mosaic_0001>

<llo_original>
// kernel: inception_cell_b.1
$region0: #{inception_cell_b.1}
  #allocation0 [shape = 'u32[]', space=smem, size = 0x4, offset = 0x4, fixed_abs, tag = 'smem constant byte address 0x4 - core index']
  #allocation1 [shape = 'u32[144,128]{1,0:T(1,128)}', space=vmem, size = 0x12000, scoped, tag = 'internal scratch']
  %s0 = inlined_call_operand.vmem [shape: f32[2,4,256], index: 0, kind: input, shape index: {}]
  %s1 = inlined_call_operand.vmem [shape: f32[24,4], index: 1, kind: input, shape index: {}]
  %s2 = inlined_call_operand.vmem [shape: f32[24,1], index: 2, kind: input, shape index: {}]
  %s3 = inlined_call_operand.vmem [shape: f32[24,1], index: 3, kind: input, shape index: {}]
  %s4 = inlined_call_operand.vmem [shape: f32[8,4], index: 4, kind: input, shape index: {}]
  %s5 = inlined_call_operand.vmem [shape: f32[8,1], index: 5, kind: input, shape index: {}]
  %s6 = inlined_call_operand.vmem [shape: f32[8,1], index: 6, kind: input, shape index: {}]
  %s7 = inlined_call_operand.vmem [shape: f32[6,8,24], index: 7, kind: input, shape index: {}]
  %s8 = inlined_call_operand.vmem [shape: f32[6,8,1], index: 8, kind: input, shape index: {}]
  %s9 = inlined_call_operand.vmem [shape: f32[6,8,1], index: 9, kind: input, shape index: {}]
  %s10 = inlined_call_operand.vmem [shape: f32[2,32,256], index: 10, kind: output, shape index: {}]
  %s11 = sld [smem:[#allocation0]]
  $region73: #{inception_cell_b.1} parent=0
    _
  %s13 = ssub.s32 1, %s11
  %s14 = scalar_select 0, %s13, %s11
  loop: start=0, step=1, limit=4
  $region2: #{inception_cell_b.1} parent=0 // loop_pre_header
    _
  $region3: #{inception_cell_b.1} parent=0 // loop_header
    %s16 = sphi 0, %s20
    %p17 = scmp.ge.s32.totalorder %s16, 4
    %s26 = sphi 0, %s28
    %s29 = sphi 0, %s26
    %s30 = sphi 0, %s29
    %s46 = sphi 0, %s30
    %s50 = sphi 0, %s50
    %s52 = sphi 0, %s50
    %s53 = sphi 0, %s52
    %s67 = sphi 0, %s53
    %s71 = sphi 0, %s71
    %s73 = sphi 0, %s71
    %s74 = sphi 0, %s73
    %s88 = sphi 0, %s74
    %s92 = sphi 0, %s92
    %s94 = sphi 0, %s92
    %s95 = sphi 0, %s94
    %s109 = sphi 0, %s95
    %s113 = sphi 0, %s113
    %s115 = sphi 0, %s113
    %s116 = sphi 0, %s115
    %s130 = sphi 0, %s116
    %s134 = sphi 0, %s134
    %s136 = sphi 0, %s134
    %s137 = sphi 0, %s136
    %s151 = sphi 0, %s137
    %s155 = sphi 0, %s155
    %s157 = sphi 0, %s155
    %s158 = sphi 0, %s157
    %s172 = sphi 0, %s158
    %s176 = sphi 0, %s176
    %s178 = sphi 0, %s176
    %s179 = sphi 0, %s178
    %s193 = sphi 0, %s179
    %s197 = sphi 0, %s197
    %s199 = sphi 0, %s197
    %s200 = sphi 0, %s199
    %s214 = sphi 0, %s200
    %s218 = sphi 0, %s218
    %s220 = sphi 0, %s218
    %s221 = sphi 0, %s220
    %s235 = sphi 0, %s221
    %s241 = sphi 0, %s243
    %s244 = sphi 0, %s241
    %s245 = sphi 0, %s244
    %s261 = sphi 0, %s245
  $region4: #{inception_cell_b.1} parent=0 // loop_header_branch
    %19 = sbr.rel (%p17) target = $region8
  $region5: #{inception_cell_b.1} parent=0 // loop_body
    %s21 = ssub.s32 %s16, 1
    %s22 = ssub.s32 %s16, 2
    %s23 = sadd.s32 %s16, 1
    %s24 = ssub.s32 %s16, %s23
    %p25 = scmp.eq.s32.totalorder %s24, 0
    %s27 = sadd.s32 %s26, 1
    %s28 = scalar_select %p25, %s26, %s27
    %p31 = pneg %p25
    %p32 = scmp.eq.s32.totalorder %s16, 1
    %p33 = por %p31, %p32
    %p34 = scmp.ne.s32.totalorder %s26, %s29
    %p35 = scmp.eq.s32.totalorder %s16, 0
    %p36 = por %p34, %p35
    %p37 = scmp.ne.s32.totalorder %s26, %s29
    %p38 = scmp.eq.s32.totalorder %s21, 1
    %p39 = por %p37, %p38
    %p40 = scmp.ne.s32.totalorder %s29, %s30
    %p41 = scmp.eq.s32.totalorder %s21, 0
    %p42 = por %p40, %p41
    %p43 = scmp.ne.s32.totalorder %s29, %s30
    %p44 = scmp.eq.s32.totalorder %s22, 1
    %p45 = por %p43, %p44
    %p47 = scmp.ne.s32.totalorder %s30, %s46
    %p48 = scmp.eq.s32.totalorder %s22, 0
    %p49 = por %p47, %p48
    %s51 = sadd.s32 %s50, 1
    %p54 = scmp.eq.s32.totalorder %s16, 1
    %p55 = scmp.ne.s32.totalorder %s50, %s52
    %p56 = scmp.eq.s32.totalorder %s16, 0
    %p57 = por %p55, %p56
    %p58 = scmp.ne.s32.totalorder %s50, %s52
    %p59 = scmp.eq.s32.totalorder %s21, 1
    %p60 = por %p58, %p59
    %p61 = scmp.ne.s32.totalorder %s52, %s53
    %p62 = scmp.eq.s32.totalorder %s21, 0
    %p63 = por %p61, %p62
    %p64 = scmp.ne.s32.totalorder %s52, %s53
    %p65 = scmp.eq.s32.totalorder %s22, 1
    %p66 = por %p64, %p65
    %p68 = scmp.ne.s32.totalorder %s53, %s67
    %p69 = scmp.eq.s32.totalorder %s22, 0
    %p70 = por %p68, %p69
    %s72 = sadd.s32 %s71, 1
    %p75 = scmp.eq.s32.totalorder %s16, 1
    %p76 = scmp.ne.s32.totalorder %s71, %s73
    %p77 = scmp.eq.s32.totalorder %s16, 0
    %p78 = por %p76, %p77
    %p79 = scmp.ne.s32.totalorder %s71, %s73
    %p80 = scmp.eq.s32.totalorder %s21, 1
    %p81 = por %p79, %p80
    %p82 = scmp.ne.s32.totalorder %s73, %s74
    %p83 = scmp.eq.s32.totalorder %s21, 0
    %p84 = por %p82, %p83
    %p85 = scmp.ne.s32.totalorder %s73, %s74
    %p86 = scmp.eq.s32.totalorder %s22, 1
    %p87 = por %p85, %p86
    %p89 = scmp.ne.s32.totalorder %s74, %s88
    %p90 = scmp.eq.s32.totalorder %s22, 0
    %p91 = por %p89, %p90
    %s93 = sadd.s32 %s92, 1
    %p96 = scmp.eq.s32.totalorder %s16, 1
    %p97 = scmp.ne.s32.totalorder %s92, %s94
    %p98 = scmp.eq.s32.totalorder %s16, 0
    %p99 = por %p97, %p98
    %p100 = scmp.ne.s32.totalorder %s92, %s94
    %p101 = scmp.eq.s32.totalorder %s21, 1
    %p102 = por %p100, %p101
    %p103 = scmp.ne.s32.totalorder %s94, %s95
    %p104 = scmp.eq.s32.totalorder %s21, 0
    %p105 = por %p103, %p104
    %p106 = scmp.ne.s32.totalorder %s94, %s95
    %p107 = scmp.eq.s32.totalorder %s22, 1
    %p108 = por %p106, %p107
    %p110 = scmp.ne.s32.totalorder %s95, %s109
    %p111 = scmp.eq.s32.totalorder %s22, 0
    %p112 = por %p110, %p111
    %s114 = sadd.s32 %s113, 1
    %p117 = scmp.eq.s32.totalorder %s16, 1
    %p118 = scmp.ne.s32.totalorder %s113, %s115
    %p119 = scmp.eq.s32.totalorder %s16, 0
    %p120 = por %p118, %p119
    %p121 = scmp.ne.s32.totalorder %s113, %s115
    %p122 = scmp.eq.s32.totalorder %s21, 1
    %p123 = por %p121, %p122
    %p124 = scmp.ne.s32.totalorder %s115, %s116
    %p125 = scmp.eq.s32.totalorder %s21, 0
    %p126 = por %p124, %p125
    %p127 = scmp.ne.s32.totalorder %s115, %s116
    %p128 = scmp.eq.s32.totalorder %s22, 1
    %p129 = por %p127, %p128
    %p131 = scmp.ne.s32.totalorder %s116, %s130
    %p132 = scmp.eq.s32.totalorder %s22, 0
    %p133 = por %p131, %p132
    %s135 = sadd.s32 %s134, 1
    %p138 = scmp.eq.s32.totalorder %s16, 1
    %p139 = scmp.ne.s32.totalorder %s134, %s136
    %p140 = scmp.eq.s32.totalorder %s16, 0
    %p141 = por %p139, %p140
    %p142 = scmp.ne.s32.totalorder %s134, %s136
    %p143 = scmp.eq.s32.totalorder %s21, 1
    %p144 = por %p142, %p143
    %p145 = scmp.ne.s32.totalorder %s136, %s137
    %p146 = scmp.eq.s32.totalorder %s21, 0
    %p147 = por %p145, %p146
    %p148 = scmp.ne.s32.totalorder %s136, %s137
    %p149 = scmp.eq.s32.totalorder %s22, 1
    %p150 = por %p148, %p149
    %p152 = scmp.ne.s32.totalorder %s137, %s151
    %p153 = scmp.eq.s32.totalorder %s22, 0
    %p154 = por %p152, %p153
    %s156 = sadd.s32 %s155, 1
    %p159 = scmp.eq.s32.totalorder %s16, 1
    %p160 = scmp.ne.s32.totalorder %s155, %s157
    %p161 = scmp.eq.s32.totalorder %s16, 0
    %p162 = por %p160, %p161
    %p163 = scmp.ne.s32.totalorder %s155, %s157
    %p164 = scmp.eq.s32.totalorder %s21, 1
    %p165 = por %p163, %p164
    %p166 = scmp.ne.s32.totalorder %s157, %s158
    %p167 = scmp.eq.s32.totalorder %s21, 0
    %p168 = por %p166, %p167
    %p169 = scmp.ne.s32.totalorder %s157, %s158
    %p170 = scmp.eq.s32.totalorder %s22, 1
    %p171 = por %p169, %p170
    %p173 = scmp.ne.s32.totalorder %s158, %s172
    %p174 = scmp.eq.s32.totalorder %s22, 0
    %p175 = por %p173, %p174
    %s177 = sadd.s32 %s176, 1
    %p180 = scmp.eq.s32.totalorder %s16, 1
    %p181 = scmp.ne.s32.totalorder %s176, %s178
    %p182 = scmp.eq.s32.totalorder %s16, 0
    %p183 = por %p181, %p182
    %p184 = scmp.ne.s32.totalorder %s176, %s178
    %p185 = scmp.eq.s32.totalorder %s21, 1
    %p186 = por %p184, %p185
    %p187 = scmp.ne.s32.totalorder %s178, %s179
    %p188 = scmp.eq.s32.totalorder %s21, 0
    %p189 = por %p187, %p188
    %p190 = scmp.ne.s32.totalorder %s178, %s179
    %p191 = scmp.eq.s32.totalorder %s22, 1
    %p192 = por %p190, %p191
    %p194 = scmp.ne.s32.totalorder %s179, %s193
    %p195 = scmp.eq.s32.totalorder %s22, 0
    %p196 = por %p194, %p195
    %s198 = sadd.s32 %s197, 1
    %p201 = scmp.eq.s32.totalorder %s16, 1
    %p202 = scmp.ne.s32.totalorder %s197, %s199
    %p203 = scmp.eq.s32.totalorder %s16, 0
    %p204 = por %p202, %p203
    %p205 = scmp.ne.s32.totalorder %s197, %s199
    %p206 = scmp.eq.s32.totalorder %s21, 1
    %p207 = por %p205, %p206
    %p208 = scmp.ne.s32.totalorder %s199, %s200
    %p209 = scmp.eq.s32.totalorder %s21, 0
    %p210 = por %p208, %p209
    %p211 = scmp.ne.s32.totalorder %s199, %s200
    %p212 = scmp.eq.s32.totalorder %s22, 1
    %p213 = por %p211, %p212
    %p215 = scmp.ne.s32.totalorder %s200, %s214
    %p216 = scmp.eq.s32.totalorder %s22, 0
    %p217 = por %p215, %p216
    %s219 = sadd.s32 %s218, 1
    %p222 = scmp.eq.s32.totalorder %s16, 1
    %p223 = scmp.ne.s32.totalorder %s218, %s220
    %p224 = scmp.eq.s32.totalorder %s16, 0
    %p225 = por %p223, %p224
    %p226 = scmp.ne.s32.totalorder %s218, %s220
    %p227 = scmp.eq.s32.totalorder %s21, 1
    %p228 = por %p226, %p227
    %p229 = scmp.ne.s32.totalorder %s220, %s221
    %p230 = scmp.eq.s32.totalorder %s21, 0
    %p231 = por %p229, %p230
    %p232 = scmp.ne.s32.totalorder %s220, %s221
    %p233 = scmp.eq.s32.totalorder %s22, 1
    %p234 = por %p232, %p233
    %p236 = scmp.ne.s32.totalorder %s221, %s235
    %p237 = scmp.eq.s32.totalorder %s22, 0
    %p238 = por %p236, %p237
    %s239 = ssub.s32 %s16, %s23
    %p240 = scmp.eq.s32.totalorder %s239, 0
    %s242 = sadd.s32 %s241, 1
    %s243 = scalar_select %p240, %s241, %s242
    %p246 = pneg %p240
    %p247 = scmp.eq.s32.totalorder %s16, 1
    %p248 = por %p246, %p247
    %p249 = scmp.ne.s32.totalorder %s241, %s244
    %p250 = scmp.eq.s32.totalorder %s16, 0
    %p251 = por %p249, %p250
    %p252 = scmp.ne.s32.totalorder %s241, %s244
    %p253 = scmp.eq.s32.totalorder %s21, 1
    %p254 = por %p252, %p253
    %p255 = scmp.ne.s32.totalorder %s244, %s245
    %p256 = scmp.eq.s32.totalorder %s21, 0
    %p257 = por %p255, %p256
    %p258 = scmp.ne.s32.totalorder %s244, %s245
    %p259 = scmp.eq.s32.totalorder %s22, 1
    %p260 = por %p258, %p259
    %p262 = scmp.ne.s32.totalorder %s245, %s261
    %p263 = scmp.eq.s32.totalorder %s22, 0
    %p264 = por %p262, %p263
    %p265 = scmp.le.s32.totalorder 1, %s16
    %p266 = scmp.lt.s32.totalorder %s16, 3
    %p267 = pnand %p265, %p266
    %p268 = pneg %p267
    // Predicated region
    $region9: #{inception_cell_b.1} parent=5 // pred_check
      _
    $region10: #{inception_cell_b.1} parent=5 // pred_check_branch
      %270 = sbr.rel (%p267) target = $region12
    $region11: #{inception_cell_b.1} parent=5 // pred_region
      %s271 = ssub.s32 %s16, 1
      // Predicated region
      $region13: #{inception_cell_b.1} parent=11 // pred_check
        %p272 = pneg %p63
      $region14: #{inception_cell_b.1} parent=11 // pred_check_branch
        %274 = sbr.rel (%p272) target = $region16
      $region15: #{inception_cell_b.1} parent=11 // pred_region
        _
      $region16: #{inception_cell_b.1} parent=11 // pred_fallthru
        _
      // Predicated region
      $region17: #{inception_cell_b.1} parent=11 // pred_check
        %p275 = pneg %p84
      $region18: #{inception_cell_b.1} parent=11 // pred_check_branch
        %277 = sbr.rel (%p275) target = $region20
      $region19: #{inception_cell_b.1} parent=11 // pred_region
        _
      $region20: #{inception_cell_b.1} parent=11 // pred_fallthru
        _
      // Predicated region
      $region21: #{inception_cell_b.1} parent=11 // pred_check
        %p278 = pneg %p105
      $region22: #{inception_cell_b.1} parent=11 // pred_check_branch
        %280 = sbr.rel (%p278) target = $region24
      $region23: #{inception_cell_b.1} parent=11 // pred_region
        _
      $region24: #{inception_cell_b.1} parent=11 // pred_fallthru
        _
      // Predicated region
      $region25: #{inception_cell_b.1} parent=11 // pred_check
        %p281 = pneg %p126
      $region26: #{inception_cell_b.1} parent=11 // pred_check_branch
        %283 = sbr.rel (%p281) target = $region28
      $region27: #{inception_cell_b.1} parent=11 // pred_region
        _
      $region28: #{inception_cell_b.1} parent=11 // pred_fallthru
        _
      // Predicated region
      $region29: #{inception_cell_b.1} parent=11 // pred_check
        %p284 = pneg %p147
      $region30: #{inception_cell_b.1} parent=11 // pred_check_branch
        %286 = sbr.rel (%p284) target = $region32
      $region31: #{inception_cell_b.1} parent=11 // pred_region
        _
      $region32: #{inception_cell_b.1} parent=11 // pred_fallthru
        _
      // Predicated region
      $region33: #{inception_cell_b.1} parent=11 // pred_check
        %p287 = pneg %p168
      $region34: #{inception_cell_b.1} parent=11 // pred_check_branch
        %289 = sbr.rel (%p287) target = $region36
      $region35: #{inception_cell_b.1} parent=11 // pred_region
        _
      $region36: #{inception_cell_b.1} parent=11 // pred_fallthru
        _
      // Predicated region
      $region37: #{inception_cell_b.1} parent=11 // pred_check
        %p290 = pneg %p189
      $region38: #{inception_cell_b.1} parent=11 // pred_check_branch
        %292 = sbr.rel (%p290) target = $region40
      $region39: #{inception_cell_b.1} parent=11 // pred_region
        _
      $region40: #{inception_cell_b.1} parent=11 // pred_fallthru
        _
      // Predicated region
      $region41: #{inception_cell_b.1} parent=11 // pred_check
        %p293 = pneg %p210
      $region42: #{inception_cell_b.1} parent=11 // pred_check_branch
        %295 = sbr.rel (%p293) target = $region44
      $region43: #{inception_cell_b.1} parent=11 // pred_region
        _
      $region44: #{inception_cell_b.1} parent=11 // pred_fallthru
        _
      // Predicated region
      $region45: #{inception_cell_b.1} parent=11 // pred_check
        %p296 = pneg %p231
      $region46: #{inception_cell_b.1} parent=11 // pred_check_branch
        %298 = sbr.rel (%p296) target = $region48
      $region47: #{inception_cell_b.1} parent=11 // pred_region
        _
      $region48: #{inception_cell_b.1} parent=11 // pred_fallthru
        _
    $region12: #{inception_cell_b.1} parent=5 // pred_fallthru
      _
    %p299 = scmp.lt.s32.totalorder %s16, 2
    // Predicated region
    $region49: #{inception_cell_b.1} parent=5 // pred_check
      %p300 = pneg %p299
    $region50: #{inception_cell_b.1} parent=5 // pred_check_branch
      %302 = sbr.rel (%p300) target = $region52
    $region51: #{inception_cell_b.1} parent=5 // pred_region
      // Predicated region
      $region53: #{inception_cell_b.1} parent=51 // pred_check
        %p303 = pneg %p36
      $region54: #{inception_cell_b.1} parent=51 // pred_check_branch
        %305 = sbr.rel (%p303) target = $region56
      $region55: #{inception_cell_b.1} parent=51 // pred_region
        %p306 = scmp.lt.s32.totalorder %s16, 1
        %s307 = scalar_select %p306, %s16, 1
        %s308 = smul.addr %s307, 2
        %s309 = smul.addr %s308, 4
        %s310 = scalar_lea.vmem %s0, %s309
      $region56: #{inception_cell_b.1} parent=51 // pred_fallthru
        _
    $region52: #{inception_cell_b.1} parent=5 // pred_fallthru
      _
    %p311 = scmp.le.s32.totalorder 1, %s16
    %p312 = scmp.lt.s32.totalorder %s16, 3
    %p313 = pnand %p311, %p312
    %p314 = pneg %p313
    // Predicated region
    $region57: #{inception_cell_b.1} parent=5 // pred_check
      _
    $region58: #{inception_cell_b.1} parent=5 // pred_check_branch
      %316 = sbr.rel (%p313) target = $region60
    $region59: #{inception_cell_b.1} parent=5 // pred_region
      %s317 = ssub.s32 %s16, 1
      %p318 = scmp.lt.s32.totalorder %s21, 1
      %s319 = scalar_select %p318, %s21, 1
      %s320 = smul.addr %s319, 2
      %s321 = smul.addr %s320, 4
      %s322 = scalar_lea.vmem %s0, %s321
      %p323 = pneg %p42
      %p324 = pneg %p39
      %p325 = pneg %p63
      %p326 = pneg %p60
      %p327 = pneg %p84
      %p328 = pneg %p81
      %p329 = pneg %p105
      %p330 = pneg %p102
      %p331 = pneg %p126
      %p332 = pneg %p123
      %p333 = pneg %p147
      %p334 = pneg %p144
      %p335 = pneg %p168
      %p336 = pneg %p165
      %p337 = pneg %p189
      %p338 = pneg %p186
      %p339 = pneg %p210
      %p340 = pneg %p207
      %p341 = pneg %p231
      %p342 = pneg %p228
      %p343 = pneg %p257
      %p344 = pneg %p254
      %p345 = scmp.lt.s32.totalorder %s21, 1
      %s346 = scalar_select %p345, %s21, 1
      %s347 = smul.addr %s346, 8
      %s348 = smul.addr %s347, 8
      %s349 = scalar_lea.vmem %s10, %s348
      %p350 = scmp.lt.s32.totalorder %s21, 1
      %s351 = scalar_select %p350, %s21, 1
      %s352 = smul.addr %s351, 2
      %s353 = smul.addr %s352, 4
      %s354 = scalar_lea.vmem %s0, %s353
      %p355 = scmp.lt.s32.totalorder %s21, 1
      %s356 = scalar_select %p355, %s21, 1
      %s357 = smul.addr %s356, 8
      %s358 = smul.addr %s357, 8
      %s359 = scalar_lea.vmem %s10, %s358
      %v360 = vld [vmem:[%s354] sm:$0xff]
      %v361 = vlaneseq
      %v362 = vand.u32 %v361, 127
      %v363 = vadd.s32 %v362, 128
      %vm364 = vcmp.lt.s32.totalorder %v362, 0
      %v365 = vsub.s32 0, %v362
      %v366 = vsel %vm364, %v365, %v362
      %v367 = vshrl.u32 %v366, 4
      %v368 = vand.u32 %v366, 15
      %v369 = vsub.s32 0, %v368
      %v370 = vsel %vm364, %v369, %v368
      %vm371 = vcmp.lt.s32.totalorder %v363, 0
      %v372 = vsub.s32 0, %v363
      %v373 = vsel %vm371, %v372, %v363
      %v374 = vshrl.u32 %v373, 4
      %v375 = vand.u32 %v373, 15
      %v376 = vsub.s32 0, %v375
      %v377 = vsel %vm371, %v376, %v375
      %vm378 = vcmp.ne.s32.totalorder %v370, 0
      %vm379 = vcmp.ne.s32.totalorder %v377, 0
      %vm380 = vcmp.lt.s32.totalorder %v370, 0
      %vm381 = vcmp.lt.s32.totalorder %v377, 0
      %vm382 = vmand %vm380, %vm378
      %vm383 = vmand %vm381, %vm379
      %v384 = vadd.s32 %v370, 16
      %v385 = vadd.s32 %v377, 16
      %v386 = vsel %vm382, %v384, %v370
      %v387 = vsel %vm383, %v385, %v377
      %vm388 = vcmp.ge.s32.totalorder %v386, 1
      %vm389 = vcmp.ge.s32.totalorder %v387, 1
      %vm390 = vcmp.le.s32.totalorder %v386, 14
      %vm391 = vcmp.le.s32.totalorder %v387, 14
      %v392 = vld [vmem:[%s1] sm:$0xff]
      %v393 = vld [vmem:[%s1 + $0x8] sm:$0xff]
      %v394 = vld [vmem:[%s1 + $0x10] sm:$0xff]
      %v396 = vcombine.high %v360, %v360
      %vm397 = vcmask 31744
      %v399 = vsel %vm397, %v392, 0
      %v402 = vsel %vm397, %v393, 0
      %v405 = vsel %vm397, %v394, 0
      %vm407 = vcmask 1043456
      %v408 = vsel %vm407, %v360, 0
      %v410 = vsel %vm407, %v396, 0
      %412 = vmatprep.subr.mxu0 0.0
      %413 = vmatpush1.msra.mxu0 0.0
      %414 = vmatprep.subr.mxu0 0.0
      %415 = vmatpush1.msra.mxu0 0.0
      %416 = vmatprep.subr.mxu0 0.0
      %417 = vmatpush1.msra.mxu0 0.0
      %418 = vmatprep.subr.mxu0 0.0
      %419 = vmatpush1.msra.mxu0 0.0
      %420 = vmatprep.subr.mxu0 0.0
      %421 = vmatpush1.msra.mxu0 0.0
      %422 = vmatprep.subr.mxu0 0.0
      %423 = vmatpush1.msra.mxu0 0.0
      %424 = vmatprep.subr.mxu0 0.0
      %425 = vmatpush1.msra.mxu0 0.0
      %426 = vmatprep.subr.mxu0 0.0
      %427 = vmatpush1.msra.mxu0 0.0
      %428 = vmatprep.subr.mxu0 0.0
      %429 = vmatpush1.msra.mxu0 0.0
      %430 = vmatprep.subr.mxu0 0.0
      %431 = vmatpush1.msra.mxu0 0.0
      %432 = vmatprep.subr.mxu0 0.0
      %433 = vmatpush1.msra.mxu0 0.0
      %434 = vmatprep.subr.mxu0 0.0
      %435 = vmatpush1.msra.mxu0 0.0
      %436 = vmatprep.subr.mxu0 0.0
      %437 = vmatpush1.msra.mxu0 0.0
      %438 = vmatprep.subr.mxu0 0.0
      %439 = vmatpush1.msra.mxu0 0.0
      %440 = vmatprep.subr.mxu0 0.0
      %441 = vmatpush1.msra.mxu0 0.0
      %442 = vmatprep.subr.mxu0 %v410
      %443 = vmatpush1.msra.mxu0 %v408
      %444 = vmatprep.subr.mxu0 0.0
      %445 = vmatpush2.msra.mxu0 0.0
      %446 = vmatprep.subr.mxu0 0.0
      %447 = vmatpush2.msra.mxu0 0.0
      %448 = vmatprep.subr.mxu0 0.0
      %449 = vmatpush2.msra.mxu0 0.0
      %450 = vmatprep.subr.mxu0 0.0
      %451 = vmatpush2.msra.mxu0 0.0
      %452 = vmatprep.subr.mxu0 0.0
      %453 = vmatpush2.msra.mxu0 0.0
      %454 = vmatprep.subr.mxu0 0.0
      %455 = vmatpush2.msra.mxu0 0.0
      %456 = vmatprep.subr.mxu0 0.0
      %457 = vmatpush2.msra.mxu0 0.0
      %458 = vmatprep.subr.mxu0 0.0
      %459 = vmatpush2.msra.mxu0 0.0
      %460 = vmatprep.subr.mxu0 0.0
      %461 = vmatpush2.msra.mxu0 0.0
      %462 = vmatprep.subr.mxu0 0.0
      %463 = vmatpush2.msra.mxu0 0.0
      %464 = vmatprep.subr.mxu0 0.0
      %465 = vmatpush2.msra.mxu0 0.0
      %466 = vmatprep.subr.mxu0 0.0
      %467 = vmatpush2.msra.mxu0 0.0
      %468 = vmatprep.subr.mxu0 0.0
      %469 = vmatpush2.msra.mxu0 0.0
      %470 = vmatprep.subr.mxu0 0.0
      %471 = vmatpush2.msra.mxu0 0.0
      %472 = vmatprep.subr.mxu0 0.0
      %473 = vmatpush2.msra.mxu0 0.0
      %474 = vmatprep.subr.mxu0 0.0
      %475 = vmatpush2.msra.mxu0 0.0
      %476 = vmatprep.mubr.f32.mxu0 0.0
      %477 = vmatmul.mubr.f32.gmra.mxu0 %v399
      %v478 = vpop.f32.mrf.mxu0
      %v479 = vadd.f32 0.0, %v478
      %v480 = vpop.f32.mrf.mxu0
      %v481 = vadd.f32 0.0, %v480
      %482 = vmatprep.mubr.f32.mxu0 0.0
      %483 = vmatmul.mubr.f32.gmra.mxu0 %v402
      %v484 = vpop.f32.mrf.mxu0
      %v485 = vadd.f32 0.0, %v484
      %v486 = vpop.f32.mrf.mxu0
      %v487 = vadd.f32 0.0, %v486
      %488 = vmatprep.mubr.f32.mxu0 0.0
      %489 = vmatmul.mubr.f32.gmra.mxu0 %v405
      %v490 = vpop.f32.mrf.mxu0
      %v491 = vadd.f32 0.0, %v490
      %v492 = vpop.f32.mrf.mxu0
      %v493 = vadd.f32 0.0, %v492
      %494 = vdwg.mxu0
      %v495 = vld [vmem:[%s2] sm:$0xff]
      %v496 = vld [vmem:[%s2 + $0x8] sm:$0xff]
      %v497 = vld [vmem:[%s2 + $0x10] sm:$0xff]
      %499 = vset.pattern.permute.xlu0 0
      %500 = vperm.xlu0 %499, %v495
      %v501 = vpop.permute.xlu0 %500
      %504 = vset.pattern.permute.xlu0 0
      %505 = vperm.xlu0 %504, %v496
      %v506 = vpop.permute.xlu0 %505
      %509 = vset.pattern.permute.xlu0 0
      %510 = vperm.xlu0 %509, %v497
      %v511 = vpop.permute.xlu0 %510
      %v513 = vmul.f32 %v479, %v501
      %v514 = vmul.f32 %v481, %v501
      %v515 = vmul.f32 %v485, %v506
      %v516 = vmul.f32 %v487, %v506
      %v517 = vmul.f32 %v491, %v511
      %v518 = vmul.f32 %v493, %v511
      %v519 = vld [vmem:[%s3] sm:$0xff]
      %v520 = vld [vmem:[%s3 + $0x8] sm:$0xff]
      %v521 = vld [vmem:[%s3 + $0x10] sm:$0xff]
      %523 = vset.pattern.permute.xlu0 0
      %524 = vperm.xlu0 %523, %v519
      %v525 = vpop.permute.xlu0 %524
      %528 = vset.pattern.permute.xlu0 0
      %529 = vperm.xlu0 %528, %v520
      %v530 = vpop.permute.xlu0 %529
      %533 = vset.pattern.permute.xlu0 0
      %534 = vperm.xlu0 %533, %v521
      %v535 = vpop.permute.xlu0 %534
      %v537 = vadd.f32 %v513, %v525
      %v538 = vadd.f32 %v514, %v525
      %v539 = vadd.f32 %v515, %v530
      %v540 = vadd.f32 %v516, %v530
      %v541 = vadd.f32 %v517, %v535
      %v542 = vadd.f32 %v518, %v535
      %v543 = vmax.f32 %v537, 0.0
      %v544 = vmax.f32 %v538, 0.0
      %v545 = vmax.f32 %v539, 0.0
      %v546 = vmax.f32 %v540, 0.0
      %v547 = vmax.f32 %v541, 0.0
      %v548 = vmax.f32 %v542, 0.0
      %v549 = vld [vmem:[%s7] sm:$0xff]
      %v550 = vld [vmem:[%s8] sm:$0xff]
      %v551 = vld [vmem:[%s9] sm:$0xff]
      %554 = vrot.lane.b32.xlu0 %v543, 16
      %v555 = vpop.permute.xlu0 %554
      %556 = vrot.lane.b32.xlu0 %v544, 16
      %v557 = vpop.permute.xlu0 %556
      %vm558 = vcmask 130048
      %v559 = vsel %vm558, %v555, %v557
      %v562 = vsel %vm558, 0.0, %v555
      %563 = vrot.lane.b32.xlu0 %v543, 112
      %v564 = vpop.permute.xlu0 %563
      %565 = vrot.lane.b32.xlu0 %v544, 112
      %v566 = vpop.permute.xlu0 %565
      %vm567 = vcmask 916480
      %v568 = vsel %vm567, %v564, %v566
      %v571 = vsel %vm567, %v566, 0.0
      %vm572 = vcmask 195584
      %v574 = vsel %vm572, %v549, 0
      %576 = vmatprep.subr.mxu0 0.0
      %577 = vmatpush1.msra.mxu0 0.0
      %578 = vmatprep.subr.mxu0 0.0
      %579 = vmatpush1.msra.mxu0 0.0
      %580 = vmatprep.subr.mxu0 0.0
      %581 = vmatpush1.msra.mxu0 0.0
      %582 = vmatprep.subr.mxu0 0.0
      %583 = vmatpush1.msra.mxu0 0.0
      %584 = vmatprep.subr.mxu0 0.0
      %585 = vmatpush1.msra.mxu0 0.0
      %586 = vmatprep.subr.mxu0 0.0
      %587 = vmatpush1.msra.mxu0 0.0
      %588 = vmatprep.subr.mxu0 0.0
      %589 = vmatpush1.msra.mxu0 0.0
      %590 = vmatprep.subr.mxu0 0.0
      %591 = vmatpush1.msra.mxu0 0.0
      %592 = vmatprep.subr.mxu0 0.0
      %593 = vmatpush1.msra.mxu0 0.0
      %594 = vmatprep.subr.mxu0 0.0
      %595 = vmatpush1.msra.mxu0 0.0
      %596 = vmatprep.subr.mxu0 0.0
      %597 = vmatpush1.msra.mxu0 0.0
      %598 = vmatprep.subr.mxu0 0.0
      %599 = vmatpush1.msra.mxu0 0.0
      %600 = vmatprep.subr.mxu0 0.0
      %601 = vmatpush1.msra.mxu0 0.0
      %602 = vmatprep.subr.mxu0 %v571
      %603 = vmatpush1.msra.mxu0 %v568
      %604 = vmatprep.subr.mxu0 %v544
      %605 = vmatpush1.msra.mxu0 %v543
      %606 = vmatprep.subr.mxu0 %v559
      %607 = vmatpush1.msra.mxu0 %v562
      %608 = vmatprep.subr.mxu0 0.0
      %609 = vmatpush2.msra.mxu0 0.0
      %610 = vmatprep.subr.mxu0 0.0
      %611 = vmatpush2.msra.mxu0 0.0
      %612 = vmatprep.subr.mxu0 0.0
      %613 = vmatpush2.msra.mxu0 0.0
      %614 = vmatprep.subr.mxu0 0.0
      %615 = vmatpush2.msra.mxu0 0.0
      %616 = vmatprep.subr.mxu0 0.0
      %617 = vmatpush2.msra.mxu0 0.0
      %618 = vmatprep.subr.mxu0 0.0
      %619 = vmatpush2.msra.mxu0 0.0
      %620 = vmatprep.subr.mxu0 0.0
      %621 = vmatpush2.msra.mxu0 0.0
      %622 = vmatprep.subr.mxu0 0.0
      %623 = vmatpush2.msra.mxu0 0.0
      %624 = vmatprep.subr.mxu0 0.0
      %625 = vmatpush2.msra.mxu0 0.0
      %626 = vmatprep.subr.mxu0 0.0
      %627 = vmatpush2.msra.mxu0 0.0
      %628 = vmatprep.subr.mxu0 0.0
      %629 = vmatpush2.msra.mxu0 0.0
      %630 = vmatprep.subr.mxu0 0.0
      %631 = vmatpush2.msra.mxu0 0.0
      %632 = vmatprep.subr.mxu0 0.0
      %633 = vmatpush2.msra.mxu0 0.0
      %634 = vmatprep.subr.mxu0 0.0
      %635 = vmatpush2.msra.mxu0 0.0
      %636 = vmatprep.subr.mxu0 0.0
      %637 = vmatpush2.msra.mxu0 0.0
      %638 = vmatprep.subr.mxu0 0.0
      %639 = vmatpush2.msra.mxu0 0.0
      %640 = vmatprep.mubr.f32.mxu0 0.0
      %641 = vmatmul.mubr.f32.gmra.mxu0 %v574
      %v642 = vpop.f32.mrf.mxu0
      %v643 = vadd.f32 0.0, %v642
      %v644 = vpop.f32.mrf.mxu0
      %v645 = vadd.f32 0.0, %v644
      %646 = vdwg.mxu0
      %648 = vset.pattern.permute.xlu0 0
      %649 = vperm.xlu0 %648, %v550
      %v650 = vpop.permute.xlu0 %649
      %v652 = vmul.f32 %v643, %v650
      %v653 = vmul.f32 %v645, %v650
      %655 = vset.pattern.permute.xlu0 0
      %656 = vperm.xlu0 %655, %v551
      %v657 = vpop.permute.xlu0 %656
      %v659 = vadd.f32 %v652, %v657
      %v660 = vadd.f32 %v653, %v657
      %v661 = vmax.f32 %v659, 0.0
      %v662 = vmax.f32 %v660, 0.0
      %s663 = scalar_lea.vmem %s7, 8
      %v664 = vld [vmem:[%s663] sm:$0xff]
      %s665 = scalar_lea.vmem %s8, 8
      %v666 = vld [vmem:[%s665] sm:$0xff]
      %s667 = scalar_lea.vmem %s9, 8
      %v668 = vld [vmem:[%s667] sm:$0xff]
      %671 = vrot.lane.b32.xlu0 %v661, 1
      %v672 = vpop.permute.xlu0 %671
      %673 = vrot.lane.b32.xlu0 %v662, 1
      %v674 = vpop.permute.xlu0 %673
      %vm675 = vcmask 7168
      %v676 = vsel %vm675, %v672, %v674
      %v679 = vsel %vm675, 0.0, %v672
      %v680 = vsel %vm388, 1, 0
      %v681 = vsel %vm389, 1, 0
      %vm682 = vcmp.eq.s32.totalorder %v680, 1
      %vm683 = vcmp.eq.s32.totalorder %v681, 1
      %v684 = vsel %vm682, %v679, 0.0
      %v685 = vsel %vm683, %v676, 0.0
      %686 = vrot.lane.b32.xlu0 %v661, 127
      %v687 = vpop.permute.xlu0 %686
      %688 = vrot.lane.b32.xlu0 %v662, 127
      %v689 = vpop.permute.xlu0 %688
      %vm690 = vcmask 1039360
      %v691 = vsel %vm690, %v687, %v689
      %v694 = vsel %vm690, %v689, 0.0
      %v695 = vsel %vm390, 1, 0
      %v696 = vsel %vm391, 1, 0
      %vm697 = vcmp.eq.s32.totalorder %v695, 1
      %vm698 = vcmp.eq.s32.totalorder %v696, 1
      %v699 = vsel %vm697, %v691, 0.0
      %v700 = vsel %vm698, %v694, 0.0
      %v702 = vsel %vm572, %v664, 0
      %704 = vmatprep.subr.mxu0 0.0
      %705 = vmatpush1.msra.mxu0 0.0
      %706 = vmatprep.subr.mxu0 0.0
      %707 = vmatpush1.msra.mxu0 0.0
      %708 = vmatprep.subr.mxu0 0.0
      %709 = vmatpush1.msra.mxu0 0.0
      %710 = vmatprep.subr.mxu0 0.0
      %711 = vmatpush1.msra.mxu0 0.0
      %712 = vmatprep.subr.mxu0 0.0
      %713 = vmatpush1.msra.mxu0 0.0
      %714 = vmatprep.subr.mxu0 0.0
      %715 = vmatpush1.msra.mxu0 0.0
      %716 = vmatprep.subr.mxu0 0.0
      %717 = vmatpush1.msra.mxu0 0.0
      %718 = vmatprep.subr.mxu0 0.0
      %719 = vmatpush1.msra.mxu0 0.0
      %720 = vmatprep.subr.mxu0 0.0
      %721 = vmatpush1.msra.mxu0 0.0
      %722 = vmatprep.subr.mxu0 0.0
      %723 = vmatpush1.msra.mxu0 0.0
      %724 = vmatprep.subr.mxu0 0.0
      %725 = vmatpush1.msra.mxu0 0.0
      %726 = vmatprep.subr.mxu0 0.0
      %727 = vmatpush1.msra.mxu0 0.0
      %728 = vmatprep.subr.mxu0 0.0
      %729 = vmatpush1.msra.mxu0 0.0
      %730 = vmatprep.subr.mxu0 %v700
      %731 = vmatpush1.msra.mxu0 %v699
      %732 = vmatprep.subr.mxu0 %v662
      %733 = vmatpush1.msra.mxu0 %v661
      %734 = vmatprep.subr.mxu0 %v685
      %735 = vmatpush1.msra.mxu0 %v684
      %736 = vmatprep.subr.mxu0 0.0
      %737 = vmatpush2.msra.mxu0 0.0
      %738 = vmatprep.subr.mxu0 0.0
      %739 = vmatpush2.msra.mxu0 0.0
      %740 = vmatprep.subr.mxu0 0.0
      %741 = vmatpush2.msra.mxu0 0.0
      %742 = vmatprep.subr.mxu0 0.0
      %743 = vmatpush2.msra.mxu0 0.0
      %744 = vmatprep.subr.mxu0 0.0
      %745 = vmatpush2.msra.mxu0 0.0
      %746 = vmatprep.subr.mxu0 0.0
      %747 = vmatpush2.msra.mxu0 0.0
      %748 = vmatprep.subr.mxu0 0.0
      %749 = vmatpush2.msra.mxu0 0.0
      %750 = vmatprep.subr.mxu0 0.0
      %751 = vmatpush2.msra.mxu0 0.0
      %752 = vmatprep.subr.mxu0 0.0
      %753 = vmatpush2.msra.mxu0 0.0
      %754 = vmatprep.subr.mxu0 0.0
      %755 = vmatpush2.msra.mxu0 0.0
      %756 = vmatprep.subr.mxu0 0.0
      %757 = vmatpush2.msra.mxu0 0.0
      %758 = vmatprep.subr.mxu0 0.0
      %759 = vmatpush2.msra.mxu0 0.0
      %760 = vmatprep.subr.mxu0 0.0
      %761 = vmatpush2.msra.mxu0 0.0
      %762 = vmatprep.subr.mxu0 0.0
      %763 = vmatpush2.msra.mxu0 0.0
      %764 = vmatprep.subr.mxu0 0.0
      %765 = vmatpush2.msra.mxu0 0.0
      %766 = vmatprep.subr.mxu0 0.0
      %767 = vmatpush2.msra.mxu0 0.0
      %768 = vmatprep.mubr.f32.mxu0 0.0
      %769 = vmatmul.mubr.f32.gmra.mxu0 %v702
      %v770 = vpop.f32.mrf.mxu0
      %v771 = vadd.f32 0.0, %v770
      %v772 = vpop.f32.mrf.mxu0
      %v773 = vadd.f32 0.0, %v772
      %774 = vdwg.mxu0
      %776 = vset.pattern.permute.xlu0 0
      %777 = vperm.xlu0 %776, %v666
      %v778 = vpop.permute.xlu0 %777
      %v780 = vmul.f32 %v771, %v778
      %v781 = vmul.f32 %v773, %v778
      %783 = vset.pattern.permute.xlu0 0
      %784 = vperm.xlu0 %783, %v668
      %v785 = vpop.permute.xlu0 %784
      %v787 = vadd.f32 %v780, %v785
      %v788 = vadd.f32 %v781, %v785
      %v789 = vmax.f32 %v787, 0.0
      %v790 = vmax.f32 %v788, 0.0
      %s791 = scalar_lea.vmem %s7, 16
      %v792 = vld [vmem:[%s791] sm:$0xff]
      %s793 = scalar_lea.vmem %s8, 16
      %v794 = vld [vmem:[%s793] sm:$0xff]
      %s795 = scalar_lea.vmem %s9, 16
      %v796 = vld [vmem:[%s795] sm:$0xff]
      %799 = vrot.lane.b32.xlu0 %v789, 16
      %v800 = vpop.permute.xlu0 %799
      %801 = vrot.lane.b32.xlu0 %v790, 16
      %v802 = vpop.permute.xlu0 %801
      %v803 = vsel %vm558, %v800, %v802
      %v806 = vsel %vm558, 0.0, %v800
      %807 = vrot.lane.b32.xlu0 %v789, 112
      %v808 = vpop.permute.xlu0 %807
      %809 = vrot.lane.b32.xlu0 %v790, 112
      %v810 = vpop.permute.xlu0 %809
      %v811 = vsel %vm567, %v808, %v810
      %v814 = vsel %vm567, %v810, 0.0
      %v816 = vsel %vm572, %v792, 0
      %818 = vmatprep.subr.mxu0 0.0
      %819 = vmatpush1.msra.mxu0 0.0
      %820 = vmatprep.subr.mxu0 0.0
      %821 = vmatpush1.msra.mxu0 0.0
      %822 = vmatprep.subr.mxu0 0.0
      %823 = vmatpush1.msra.mxu0 0.0
      %824 = vmatprep.subr.mxu0 0.0
      %825 = vmatpush1.msra.mxu0 0.0
      %826 = vmatprep.subr.mxu0 0.0
      %827 = vmatpush1.msra.mxu0 0.0
      %828 = vmatprep.subr.mxu0 0.0
      %829 = vmatpush1.msra.mxu0 0.0
      %830 = vmatprep.subr.mxu0 0.0
      %831 = vmatpush1.msra.mxu0 0.0
      %832 = vmatprep.subr.mxu0 0.0
      %833 = vmatpush1.msra.mxu0 0.0
      %834 = vmatprep.subr.mxu0 0.0
      %835 = vmatpush1.msra.mxu0 0.0
      %836 = vmatprep.subr.mxu0 0.0
      %837 = vmatpush1.msra.mxu0 0.0
      %838 = vmatprep.subr.mxu0 0.0
      %839 = vmatpush1.msra.mxu0 0.0
      %840 = vmatprep.subr.mxu0 0.0
      %841 = vmatpush1.msra.mxu0 0.0
      %842 = vmatprep.subr.mxu0 0.0
      %843 = vmatpush1.msra.mxu0 0.0
      %844 = vmatprep.subr.mxu0 %v814
      %845 = vmatpush1.msra.mxu0 %v811
      %846 = vmatprep.subr.mxu0 %v790
      %847 = vmatpush1.msra.mxu0 %v789
      %848 = vmatprep.subr.mxu0 %v803
      %849 = vmatpush1.msra.mxu0 %v806
      %850 = vmatprep.subr.mxu0 0.0
      %851 = vmatpush2.msra.mxu0 0.0
      %852 = vmatprep.subr.mxu0 0.0
      %853 = vmatpush2.msra.mxu0 0.0
      %854 = vmatprep.subr.mxu0 0.0
      %855 = vmatpush2.msra.mxu0 0.0
      %856 = vmatprep.subr.mxu0 0.0
      %857 = vmatpush2.msra.mxu0 0.0
      %858 = vmatprep.subr.mxu0 0.0
      %859 = vmatpush2.msra.mxu0 0.0
      %860 = vmatprep.subr.mxu0 0.0
      %861 = vmatpush2.msra.mxu0 0.0
      %862 = vmatprep.subr.mxu0 0.0
      %863 = vmatpush2.msra.mxu0 0.0
      %864 = vmatprep.subr.mxu0 0.0
      %865 = vmatpush2.msra.mxu0 0.0
      %866 = vmatprep.subr.mxu0 0.0
      %867 = vmatpush2.msra.mxu0 0.0
      %868 = vmatprep.subr.mxu0 0.0
      %869 = vmatpush2.msra.mxu0 0.0
      %870 = vmatprep.subr.mxu0 0.0
      %871 = vmatpush2.msra.mxu0 0.0
      %872 = vmatprep.subr.mxu0 0.0
      %873 = vmatpush2.msra.mxu0 0.0
      %874 = vmatprep.subr.mxu0 0.0
      %875 = vmatpush2.msra.mxu0 0.0
      %876 = vmatprep.subr.mxu0 0.0
      %877 = vmatpush2.msra.mxu0 0.0
      %878 = vmatprep.subr.mxu0 0.0
      %879 = vmatpush2.msra.mxu0 0.0
      %880 = vmatprep.subr.mxu0 0.0
      %881 = vmatpush2.msra.mxu0 0.0
      %882 = vmatprep.mubr.f32.mxu0 0.0
      %883 = vmatmul.mubr.f32.gmra.mxu0 %v816
      %v884 = vpop.f32.mrf.mxu0
      %v885 = vadd.f32 0.0, %v884
      %v886 = vpop.f32.mrf.mxu0
      %v887 = vadd.f32 0.0, %v886
      %888 = vdwg.mxu0
      %890 = vset.pattern.permute.xlu0 0
      %891 = vperm.xlu0 %890, %v794
      %v892 = vpop.permute.xlu0 %891
      %v894 = vmul.f32 %v885, %v892
      %v895 = vmul.f32 %v887, %v892
      %897 = vset.pattern.permute.xlu0 0
      %898 = vperm.xlu0 %897, %v796
      %v899 = vpop.permute.xlu0 %898
      %v901 = vadd.f32 %v894, %v899
      %v902 = vadd.f32 %v895, %v899
      %v903 = vmax.f32 %v901, 0.0
      %v904 = vmax.f32 %v902, 0.0
      %s905 = scalar_lea.vmem %s7, 24
      %v906 = vld [vmem:[%s905] sm:$0xff]
      %s907 = scalar_lea.vmem %s8, 24
      %v908 = vld [vmem:[%s907] sm:$0xff]
      %s909 = scalar_lea.vmem %s9, 24
      %v910 = vld [vmem:[%s909] sm:$0xff]
      %913 = vrot.lane.b32.xlu0 %v903, 1
      %v914 = vpop.permute.xlu0 %913
      %915 = vrot.lane.b32.xlu0 %v904, 1
      %v916 = vpop.permute.xlu0 %915
      %v917 = vsel %vm675, %v914, %v916
      %v920 = vsel %vm675, 0.0, %v914
      %v921 = vsel %vm682, %v920, 0.0
      %v922 = vsel %vm683, %v917, 0.0
      %923 = vrot.lane.b32.xlu0 %v903, 127
      %v924 = vpop.permute.xlu0 %923
      %925 = vrot.lane.b32.xlu0 %v904, 127
      %v926 = vpop.permute.xlu0 %925
      %v927 = vsel %vm690, %v924, %v926
      %v930 = vsel %vm690, %v926, 0.0
      %v931 = vsel %vm697, %v927, 0.0
      %v932 = vsel %vm698, %v930, 0.0
      %v934 = vsel %vm572, %v906, 0
      %936 = vmatprep.subr.mxu0 0.0
      %937 = vmatpush1.msra.mxu0 0.0
      %938 = vmatprep.subr.mxu0 0.0
      %939 = vmatpush1.msra.mxu0 0.0
      %940 = vmatprep.subr.mxu0 0.0
      %941 = vmatpush1.msra.mxu0 0.0
      %942 = vmatprep.subr.mxu0 0.0
      %943 = vmatpush1.msra.mxu0 0.0
      %944 = vmatprep.subr.mxu0 0.0
      %945 = vmatpush1.msra.mxu0 0.0
      %946 = vmatprep.subr.mxu0 0.0
      %947 = vmatpush1.msra.mxu0 0.0
      %948 = vmatprep.subr.mxu0 0.0
      %949 = vmatpush1.msra.mxu0 0.0
      %950 = vmatprep.subr.mxu0 0.0
      %951 = vmatpush1.msra.mxu0 0.0
      %952 = vmatprep.subr.mxu0 0.0
      %953 = vmatpush1.msra.mxu0 0.0
      %954 = vmatprep.subr.mxu0 0.0
      %955 = vmatpush1.msra.mxu0 0.0
      %956 = vmatprep.subr.mxu0 0.0
      %957 = vmatpush1.msra.mxu0 0.0
      %958 = vmatprep.subr.mxu0 0.0
      %959 = vmatpush1.msra.mxu0 0.0
      %960 = vmatprep.subr.mxu0 0.0
      %961 = vmatpush1.msra.mxu0 0.0
      %962 = vmatprep.subr.mxu0 %v932
      %963 = vmatpush1.msra.mxu0 %v931
      %964 = vmatprep.subr.mxu0 %v904
      %965 = vmatpush1.msra.mxu0 %v903
      %966 = vmatprep.subr.mxu0 %v922
      %967 = vmatpush1.msra.mxu0 %v921
      %968 = vmatprep.subr.mxu0 0.0
      %969 = vmatpush2.msra.mxu0 0.0
      %970 = vmatprep.subr.mxu0 0.0
      %971 = vmatpush2.msra.mxu0 0.0
      %972 = vmatprep.subr.mxu0 0.0
      %973 = vmatpush2.msra.mxu0 0.0
      %974 = vmatprep.subr.mxu0 0.0
      %975 = vmatpush2.msra.mxu0 0.0
      %976 = vmatprep.subr.mxu0 0.0
      %977 = vmatpush2.msra.mxu0 0.0
      %978 = vmatprep.subr.mxu0 0.0
      %979 = vmatpush2.msra.mxu0 0.0
      %980 = vmatprep.subr.mxu0 0.0
      %981 = vmatpush2.msra.mxu0 0.0
      %982 = vmatprep.subr.mxu0 0.0
      %983 = vmatpush2.msra.mxu0 0.0
      %984 = vmatprep.subr.mxu0 0.0
      %985 = vmatpush2.msra.mxu0 0.0
      %986 = vmatprep.subr.mxu0 0.0
      %987 = vmatpush2.msra.mxu0 0.0
      %988 = vmatprep.subr.mxu0 0.0
      %989 = vmatpush2.msra.mxu0 0.0
      %990 = vmatprep.subr.mxu0 0.0
      %991 = vmatpush2.msra.mxu0 0.0
      %992 = vmatprep.subr.mxu0 0.0
      %993 = vmatpush2.msra.mxu0 0.0
      %994 = vmatprep.subr.mxu0 0.0
      %995 = vmatpush2.msra.mxu0 0.0
      %996 = vmatprep.subr.mxu0 0.0
      %997 = vmatpush2.msra.mxu0 0.0
      %998 = vmatprep.subr.mxu0 0.0
      %999 = vmatpush2.msra.mxu0 0.0
      %1000 = vmatprep.mubr.f32.mxu0 0.0
      %1001 = vmatmul.mubr.f32.gmra.mxu0 %v934
      %v1002 = vpop.f32.mrf.mxu0
      %v1003 = vadd.f32 0.0, %v1002
      %v1004 = vpop.f32.mrf.mxu0
      %v1005 = vadd.f32 0.0, %v1004
      %1006 = vdwg.mxu0
      %1008 = vset.pattern.permute.xlu0 0
      %1009 = vperm.xlu0 %1008, %v908
      %v1010 = vpop.permute.xlu0 %1009
      %v1012 = vmul.f32 %v1003, %v1010
      %v1013 = vmul.f32 %v1005, %v1010
      %1015 = vset.pattern.permute.xlu0 0
      %1016 = vperm.xlu0 %1015, %v910
      %v1017 = vpop.permute.xlu0 %1016
      %v1019 = vadd.f32 %v1012, %v1017
      %v1020 = vadd.f32 %v1013, %v1017
      %v1021 = vmax.f32 %v1019, 0.0
      %v1022 = vmax.f32 %v1020, 0.0
      %s1023 = scalar_lea.vmem %s7, 32
      %v1024 = vld [vmem:[%s1023] sm:$0xff]
      %s1025 = scalar_lea.vmem %s8, 32
      %v1026 = vld [vmem:[%s1025] sm:$0xff]
      %s1027 = scalar_lea.vmem %s9, 32
      %v1028 = vld [vmem:[%s1027] sm:$0xff]
      %1031 = vrot.lane.b32.xlu0 %v545, 16
      %v1032 = vpop.permute.xlu0 %1031
      %1033 = vrot.lane.b32.xlu0 %v546, 16
      %v1034 = vpop.permute.xlu0 %1033
      %v1035 = vsel %vm558, %v1032, %v1034
      %v1038 = vsel %vm558, 0.0, %v1032
      %1039 = vrot.lane.b32.xlu0 %v545, 112
      %v1040 = vpop.permute.xlu0 %1039
      %1041 = vrot.lane.b32.xlu0 %v546, 112
      %v1042 = vpop.permute.xlu0 %1041
      %v1043 = vsel %vm567, %v1040, %v1042
      %v1046 = vsel %vm567, %v1042, 0.0
      %v1048 = vsel %vm572, %v1024, 0
      %1050 = vmatprep.subr.mxu0 0.0
      %1051 = vmatpush1.msra.mxu0 0.0
      %1052 = vmatprep.subr.mxu0 0.0
      %1053 = vmatpush1.msra.mxu0 0.0
      %1054 = vmatprep.subr.mxu0 0.0
      %1055 = vmatpush1.msra.mxu0 0.0
      %1056 = vmatprep.subr.mxu0 0.0
      %1057 = vmatpush1.msra.mxu0 0.0
      %1058 = vmatprep.subr.mxu0 0.0
      %1059 = vmatpush1.msra.mxu0 0.0
      %1060 = vmatprep.subr.mxu0 0.0
      %1061 = vmatpush1.msra.mxu0 0.0
      %1062 = vmatprep.subr.mxu0 0.0
      %1063 = vmatpush1.msra.mxu0 0.0
      %1064 = vmatprep.subr.mxu0 0.0
      %1065 = vmatpush1.msra.mxu0 0.0
      %1066 = vmatprep.subr.mxu0 0.0
      %1067 = vmatpush1.msra.mxu0 0.0
      %1068 = vmatprep.subr.mxu0 0.0
      %1069 = vmatpush1.msra.mxu0 0.0
      %1070 = vmatprep.subr.mxu0 0.0
      %1071 = vmatpush1.msra.mxu0 0.0
      %1072 = vmatprep.subr.mxu0 0.0
      %1073 = vmatpush1.msra.mxu0 0.0
      %1074 = vmatprep.subr.mxu0 0.0
      %1075 = vmatpush1.msra.mxu0 0.0
      %1076 = vmatprep.subr.mxu0 %v1046
      %1077 = vmatpush1.msra.mxu0 %v1043
      %1078 = vmatprep.subr.mxu0 %v546
      %1079 = vmatpush1.msra.mxu0 %v545
      %1080 = vmatprep.subr.mxu0 %v1035
      %1081 = vmatpush1.msra.mxu0 %v1038
      %1082 = vmatprep.subr.mxu0 0.0
      %1083 = vmatpush2.msra.mxu0 0.0
      %1084 = vmatprep.subr.mxu0 0.0
      %1085 = vmatpush2.msra.mxu0 0.0
      %1086 = vmatprep.subr.mxu0 0.0
      %1087 = vmatpush2.msra.mxu0 0.0
      %1088 = vmatprep.subr.mxu0 0.0
      %1089 = vmatpush2.msra.mxu0 0.0
      %1090 = vmatprep.subr.mxu0 0.0
      %1091 = vmatpush2.msra.mxu0 0.0
      %1092 = vmatprep.subr.mxu0 0.0
      %1093 = vmatpush2.msra.mxu0 0.0
      %1094 = vmatprep.subr.mxu0 0.0
      %1095 = vmatpush2.msra.mxu0 0.0
      %1096 = vmatprep.subr.mxu0 0.0
      %1097 = vmatpush2.msra.mxu0 0.0
      %1098 = vmatprep.subr.mxu0 0.0
      %1099 = vmatpush2.msra.mxu0 0.0
      %1100 = vmatprep.subr.mxu0 0.0
      %1101 = vmatpush2.msra.mxu0 0.0
      %1102 = vmatprep.subr.mxu0 0.0
      %1103 = vmatpush2.msra.mxu0 0.0
      %1104 = vmatprep.subr.mxu0 0.0
      %1105 = vmatpush2.msra.mxu0 0.0
      %1106 = vmatprep.subr.mxu0 0.0
      %1107 = vmatpush2.msra.mxu0 0.0
      %1108 = vmatprep.subr.mxu0 0.0
      %1109 = vmatpush2.msra.mxu0 0.0
      %1110 = vmatprep.subr.mxu0 0.0
      %1111 = vmatpush2.msra.mxu0 0.0
      %1112 = vmatprep.subr.mxu0 0.0
      %1113 = vmatpush2.msra.mxu0 0.0
      %1114 = vmatprep.mubr.f32.mxu0 0.0
      %1115 = vmatmul.mubr.f32.gmra.mxu0 %v1048
      %v1116 = vpop.f32.mrf.mxu0
      %v1117 = vadd.f32 0.0, %v1116
      %v1118 = vpop.f32.mrf.mxu0
      %v1119 = vadd.f32 0.0, %v1118
      %1120 = vdwg.mxu0
      %1122 = vset.pattern.permute.xlu0 0
      %1123 = vperm.xlu0 %1122, %v1026
      %v1124 = vpop.permute.xlu0 %1123
      %v1126 = vmul.f32 %v1117, %v1124
      %v1127 = vmul.f32 %v1119, %v1124
      %1129 = vset.pattern.permute.xlu0 0
      %1130 = vperm.xlu0 %1129, %v1028
      %v1131 = vpop.permute.xlu0 %1130
      %v1133 = vadd.f32 %v1126, %v1131
      %v1134 = vadd.f32 %v1127, %v1131
      %v1135 = vmax.f32 %v1133, 0.0
      %v1136 = vmax.f32 %v1134, 0.0
      %s1137 = scalar_lea.vmem %s7, 40
      %v1138 = vld [vmem:[%s1137] sm:$0xff]
      %s1139 = scalar_lea.vmem %s8, 40
      %v1140 = vld [vmem:[%s1139] sm:$0xff]
      %s1141 = scalar_lea.vmem %s9, 40
      %v1142 = vld [vmem:[%s1141] sm:$0xff]
      %1145 = vrot.lane.b32.xlu0 %v1135, 1
      %v1146 = vpop.permute.xlu0 %1145
      %1147 = vrot.lane.b32.xlu0 %v1136, 1
      %v1148 = vpop.permute.xlu0 %1147
      %v1149 = vsel %vm675, %v1146, %v1148
      %v1152 = vsel %vm675, 0.0, %v1146
      %v1153 = vsel %vm682, %v1152, 0.0
      %v1154 = vsel %vm683, %v1149, 0.0
      %1155 = vrot.lane.b32.xlu0 %v1135, 127
      %v1156 = vpop.permute.xlu0 %1155
      %1157 = vrot.lane.b32.xlu0 %v1136, 127
      %v1158 = vpop.permute.xlu0 %1157
      %v1159 = vsel %vm690, %v1156, %v1158
      %v1162 = vsel %vm690, %v1158, 0.0
      %v1163 = vsel %vm697, %v1159, 0.0
      %v1164 = vsel %vm698, %v1162, 0.0
      %v1166 = vsel %vm572, %v1138, 0
      %1168 = vmatprep.subr.mxu0 0.0
      %1169 = vmatpush1.msra.mxu0 0.0
      %1170 = vmatprep.subr.mxu0 0.0
      %1171 = vmatpush1.msra.mxu0 0.0
      %1172 = vmatprep.subr.mxu0 0.0
      %1173 = vmatpush1.msra.mxu0 0.0
      %1174 = vmatprep.subr.mxu0 0.0
      %1175 = vmatpush1.msra.mxu0 0.0
      %1176 = vmatprep.subr.mxu0 0.0
      %1177 = vmatpush1.msra.mxu0 0.0
      %1178 = vmatprep.subr.mxu0 0.0
      %1179 = vmatpush1.msra.mxu0 0.0
      %1180 = vmatprep.subr.mxu0 0.0
      %1181 = vmatpush1.msra.mxu0 0.0
      %1182 = vmatprep.subr.mxu0 0.0
      %1183 = vmatpush1.msra.mxu0 0.0
      %1184 = vmatprep.subr.mxu0 0.0
      %1185 = vmatpush1.msra.mxu0 0.0
      %1186 = vmatprep.subr.mxu0 0.0
      %1187 = vmatpush1.msra.mxu0 0.0
      %1188 = vmatprep.subr.mxu0 0.0
      %1189 = vmatpush1.msra.mxu0 0.0
      %1190 = vmatprep.subr.mxu0 0.0
      %1191 = vmatpush1.msra.mxu0 0.0
      %1192 = vmatprep.subr.mxu0 0.0
      %1193 = vmatpush1.msra.mxu0 0.0
      %1194 = vmatprep.subr.mxu0 %v1164
      %1195 = vmatpush1.msra.mxu0 %v1163
      %1196 = vmatprep.subr.mxu0 %v1136
      %1197 = vmatpush1.msra.mxu0 %v1135
      %1198 = vmatprep.subr.mxu0 %v1154
      %1199 = vmatpush1.msra.mxu0 %v1153
      %1200 = vmatprep.subr.mxu0 0.0
      %1201 = vmatpush2.msra.mxu0 0.0
      %1202 = vmatprep.subr.mxu0 0.0
      %1203 = vmatpush2.msra.mxu0 0.0
      %1204 = vmatprep.subr.mxu0 0.0
      %1205 = vmatpush2.msra.mxu0 0.0
      %1206 = vmatprep.subr.mxu0 0.0
      %1207 = vmatpush2.msra.mxu0 0.0
      %1208 = vmatprep.subr.mxu0 0.0
      %1209 = vmatpush2.msra.mxu0 0.0
      %1210 = vmatprep.subr.mxu0 0.0
      %1211 = vmatpush2.msra.mxu0 0.0
      %1212 = vmatprep.subr.mxu0 0.0
      %1213 = vmatpush2.msra.mxu0 0.0
      %1214 = vmatprep.subr.mxu0 0.0
      %1215 = vmatpush2.msra.mxu0 0.0
      %1216 = vmatprep.subr.mxu0 0.0
      %1217 = vmatpush2.msra.mxu0 0.0
      %1218 = vmatprep.subr.mxu0 0.0
      %1219 = vmatpush2.msra.mxu0 0.0
      %1220 = vmatprep.subr.mxu0 0.0
      %1221 = vmatpush2.msra.mxu0 0.0
      %1222 = vmatprep.subr.mxu0 0.0
      %1223 = vmatpush2.msra.mxu0 0.0
      %1224 = vmatprep.subr.mxu0 0.0
      %1225 = vmatpush2.msra.mxu0 0.0
      %1226 = vmatprep.subr.mxu0 0.0
      %1227 = vmatpush2.msra.mxu0 0.0
      %1228 = vmatprep.subr.mxu0 0.0
      %1229 = vmatpush2.msra.mxu0 0.0
      %1230 = vmatprep.subr.mxu0 0.0
      %1231 = vmatpush2.msra.mxu0 0.0
      %1232 = vmatprep.mubr.f32.mxu0 0.0
      %1233 = vmatmul.mubr.f32.gmra.mxu0 %v1166
      %v1234 = vpop.f32.mrf.mxu0
      %v1235 = vadd.f32 0.0, %v1234
      %v1236 = vpop.f32.mrf.mxu0
      %v1237 = vadd.f32 0.0, %v1236
      %1238 = vdwg.mxu0
      %1240 = vset.pattern.permute.xlu0 0
      %1241 = vperm.xlu0 %1240, %v1140
      %v1242 = vpop.permute.xlu0 %1241
      %v1244 = vmul.f32 %v1235, %v1242
      %v1245 = vmul.f32 %v1237, %v1242
      %1247 = vset.pattern.permute.xlu0 0
      %1248 = vperm.xlu0 %1247, %v1142
      %v1249 = vpop.permute.xlu0 %1248
      %v1251 = vadd.f32 %v1244, %v1249
      %v1252 = vadd.f32 %v1245, %v1249
      %v1253 = vmax.f32 %v1251, 0.0
      %v1254 = vmax.f32 %v1252, 0.0
      %1255 = vrot.lane.b32.xlu0 %v360, 17
      %v1256 = vpop.permute.xlu0 %1255
      %1257 = vrot.lane.b32.xlu0 %v396, 17
      %v1258 = vpop.permute.xlu0 %1257
      %vm1259 = vcmask 138240
      %v1260 = vsel %vm1259, %v1256, %v1258
      %v1263 = vsel %vm1259, -inf, %v1256
      %v1264 = vsel %vm682, %v1263, -inf
      %v1265 = vsel %vm683, %v1260, -inf
      %v1268 = vcombine.low %v1264, %v1265
      %v1270 = vmax.f32 %v360, %v1268
      %1271 = vrot.lane.b32.xlu0 %v360, 16
      %v1272 = vpop.permute.xlu0 %1271
      %1273 = vrot.lane.b32.xlu0 %v396, 16
      %v1274 = vpop.permute.xlu0 %1273
      %v1275 = vsel %vm558, %v1272, %v1274
      %v1277 = vsel %vm558, -inf, %v1272
      %v1279 = vcombine.low %v1277, %v1275
      %v1281 = vmax.f32 %v1270, %v1279
      %1282 = vrot.lane.b32.xlu0 %v360, 15
      %v1283 = vpop.permute.xlu0 %1282
      %1284 = vrot.lane.b32.xlu0 %v396, 15
      %v1285 = vpop.permute.xlu0 %1284
      %vm1286 = vcmask 121856
      %v1287 = vsel %vm1286, %v1283, %v1285
      %v1290 = vsel %vm1286, -inf, %v1283
      %v1291 = vsel %vm697, %v1290, -inf
      %v1292 = vsel %vm698, %v1287, -inf
      %v1295 = vcombine.low %v1291, %v1292
      %v1297 = vmax.f32 %v1281, %v1295
      %1298 = vrot.lane.b32.xlu0 %v360, 1
      %v1299 = vpop.permute.xlu0 %1298
      %1300 = vrot.lane.b32.xlu0 %v396, 1
      %v1301 = vpop.permute.xlu0 %1300
      %v1302 = vsel %vm675, %v1299, %v1301
      %v1305 = vsel %vm675, -inf, %v1299
      %v1306 = vsel %vm682, %v1305, -inf
      %v1307 = vsel %vm683, %v1302, -inf
      %v1310 = vcombine.low %v1306, %v1307
      %v1312 = vmax.f32 %v1297, %v1310
      %1313 = vrot.lane.b32.xlu0 %v360, 127
      %v1314 = vpop.permute.xlu0 %1313
      %1315 = vrot.lane.b32.xlu0 %v396, 127
      %v1316 = vpop.permute.xlu0 %1315
      %v1317 = vsel %vm690, %v1314, %v1316
      %v1320 = vsel %vm690, %v1316, -inf
      %v1321 = vsel %vm697, %v1317, -inf
      %v1322 = vsel %vm698, %v1320, -inf
      %v1325 = vcombine.low %v1321, %v1322
      %v1327 = vmax.f32 %v1312, %v1325
      %1328 = vrot.lane.b32.xlu0 %v360, 113
      %v1329 = vpop.permute.xlu0 %1328
      %1330 = vrot.lane.b32.xlu0 %v396, 113
      %v1331 = vpop.permute.xlu0 %1330
      %vm1332 = vcmask 924672
      %v1333 = vsel %vm1332, %v1329, %v1331
      %v1336 = vsel %vm1332, %v1331, -inf
      %v1337 = vsel %vm682, %v1333, -inf
      %v1338 = vsel %vm683, %v1336, -inf
      %v1341 = vcombine.low %v1337, %v1338
      %v1343 = vmax.f32 %v1327, %v1341
      %1344 = vrot.lane.b32.xlu0 %v360, 112
      %v1345 = vpop.permute.xlu0 %1344
      %1346 = vrot.lane.b32.xlu0 %v396, 112
      %v1347 = vpop.permute.xlu0 %1346
      %v1348 = vsel %vm567, %v1345, %v1347
      %v1350 = vsel %vm567, %v1347, -inf
      %v1352 = vcombine.low %v1348, %v1350
      %v1354 = vmax.f32 %v1343, %v1352
      %1355 = vrot.lane.b32.xlu0 %v360, 111
      %v1356 = vpop.permute.xlu0 %1355
      %1357 = vrot.lane.b32.xlu0 %v396, 111
      %v1358 = vpop.permute.xlu0 %1357
      %vm1359 = vcmask 908288
      %v1360 = vsel %vm1359, %v1356, %v1358
      %v1363 = vsel %vm1359, %v1358, -inf
      %v1364 = vsel %vm697, %v1360, -inf
      %v1365 = vsel %vm698, %v1363, -inf
      %v1368 = vcombine.low %v1364, %v1365
      %v1370 = vmax.f32 %v1354, %v1368
      %v1371 = vld [vmem:[%s4] sm:$0xff]
      %v1373 = vcombine.high %v1370, %v1370
      %v1375 = vsel %vm397, %v1371, 0
      %v1377 = vsel %vm407, %v1370, 0
      %v1379 = vsel %vm407, %v1373, 0
      %1381 = vmatprep.subr.mxu0 0.0
      %1382 = vmatpush1.msra.mxu0 0.0
      %1383 = vmatprep.subr.mxu0 0.0
      %1384 = vmatpush1.msra.mxu0 0.0
      %1385 = vmatprep.subr.mxu0 0.0
      %1386 = vmatpush1.msra.mxu0 0.0
      %1387 = vmatprep.subr.mxu0 0.0
      %1388 = vmatpush1.msra.mxu0 0.0
      %1389 = vmatprep.subr.mxu0 0.0
      %1390 = vmatpush1.msra.mxu0 0.0
      %1391 = vmatprep.subr.mxu0 0.0
      %1392 = vmatpush1.msra.mxu0 0.0
      %1393 = vmatprep.subr.mxu0 0.0
      %1394 = vmatpush1.msra.mxu0 0.0
      %1395 = vmatprep.subr.mxu0 0.0
      %1396 = vmatpush1.msra.mxu0 0.0
      %1397 = vmatprep.subr.mxu0 0.0
      %1398 = vmatpush1.msra.mxu0 0.0
      %1399 = vmatprep.subr.mxu0 0.0
      %1400 = vmatpush1.msra.mxu0 0.0
      %1401 = vmatprep.subr.mxu0 0.0
      %1402 = vmatpush1.msra.mxu0 0.0
      %1403 = vmatprep.subr.mxu0 0.0
      %1404 = vmatpush1.msra.mxu0 0.0
      %1405 = vmatprep.subr.mxu0 0.0
      %1406 = vmatpush1.msra.mxu0 0.0
      %1407 = vmatprep.subr.mxu0 0.0
      %1408 = vmatpush1.msra.mxu0 0.0
      %1409 = vmatprep.subr.mxu0 0.0
      %1410 = vmatpush1.msra.mxu0 0.0
      %1411 = vmatprep.subr.mxu0 %v1379
      %1412 = vmatpush1.msra.mxu0 %v1377
      %1413 = vmatprep.subr.mxu0 0.0
      %1414 = vmatpush2.msra.mxu0 0.0
      %1415 = vmatprep.subr.mxu0 0.0
      %1416 = vmatpush2.msra.mxu0 0.0
      %1417 = vmatprep.subr.mxu0 0.0
      %1418 = vmatpush2.msra.mxu0 0.0
      %1419 = vmatprep.subr.mxu0 0.0
      %1420 = vmatpush2.msra.mxu0 0.0
      %1421 = vmatprep.subr.mxu0 0.0
      %1422 = vmatpush2.msra.mxu0 0.0
      %1423 = vmatprep.subr.mxu0 0.0
      %1424 = vmatpush2.msra.mxu0 0.0
      %1425 = vmatprep.subr.mxu0 0.0
      %1426 = vmatpush2.msra.mxu0 0.0
      %1427 = vmatprep.subr.mxu0 0.0
      %1428 = vmatpush2.msra.mxu0 0.0
      %1429 = vmatprep.subr.mxu0 0.0
      %1430 = vmatpush2.msra.mxu0 0.0
      %1431 = vmatprep.subr.mxu0 0.0
      %1432 = vmatpush2.msra.mxu0 0.0
      %1433 = vmatprep.subr.mxu0 0.0
      %1434 = vmatpush2.msra.mxu0 0.0
      %1435 = vmatprep.subr.mxu0 0.0
      %1436 = vmatpush2.msra.mxu0 0.0
      %1437 = vmatprep.subr.mxu0 0.0
      %1438 = vmatpush2.msra.mxu0 0.0
      %1439 = vmatprep.subr.mxu0 0.0
      %1440 = vmatpush2.msra.mxu0 0.0
      %1441 = vmatprep.subr.mxu0 0.0
      %1442 = vmatpush2.msra.mxu0 0.0
      %1443 = vmatprep.subr.mxu0 0.0
      %1444 = vmatpush2.msra.mxu0 0.0
      %1445 = vmatprep.mubr.f32.mxu0 0.0
      %1446 = vmatmul.mubr.f32.gmra.mxu0 %v1375
      %v1447 = vpop.f32.mrf.mxu0
      %v1448 = vadd.f32 0.0, %v1447
      %v1449 = vpop.f32.mrf.mxu0
      %v1450 = vadd.f32 0.0, %v1449
      %1451 = vdwg.mxu0
      %v1452 = vld [vmem:[%s5] sm:$0xff]
      %1454 = vset.pattern.permute.xlu0 0
      %1455 = vperm.xlu0 %1454, %v1452
      %v1456 = vpop.permute.xlu0 %1455
      %v1458 = vmul.f32 %v1448, %v1456
      %v1459 = vmul.f32 %v1450, %v1456
      %v1460 = vld [vmem:[%s6] sm:$0xff]
      %1462 = vset.pattern.permute.xlu0 0
      %1463 = vperm.xlu0 %1462, %v1460
      %v1464 = vpop.permute.xlu0 %1463
      %v1466 = vadd.f32 %v1458, %v1464
      %v1467 = vadd.f32 %v1459, %v1464
      %v1468 = vmax.f32 %v1466, 0.0
      %v1469 = vmax.f32 %v1467, 0.0
      %1470 = vst [vmem:[%s359] sm:$0xff] %v1021
      %1471 = vst [vmem:[%s359 + $0x8] sm:$0xff] %v1022
      %1472 = vst [vmem:[%s359 + $0x10] sm:$0xff] %v1253
      %1473 = vst [vmem:[%s359 + $0x18] sm:$0xff] %v1254
      %1474 = vst [vmem:[%s359 + $0x20] sm:$0xff] %v1468
      %1475 = vst [vmem:[%s359 + $0x28] sm:$0xff] %v1469
      %1476 = vst [vmem:[%s359 + $0x30] sm:$0xff] %v547
      %1477 = vst [vmem:[%s359 + $0x38] sm:$0xff] %v548
      %p1478 = scmp.lt.s32.totalorder %s21, 1
      %s1479 = scalar_select %p1478, %s21, 1
      %s1480 = smul.addr %s1479, 8
      %s1481 = smul.addr %s1480, 8
      %s1482 = scalar_lea.vmem %s10, %s1481
      // Predicated region
      $region61: #{inception_cell_b.1} parent=59 // pred_check
        %p1483 = pneg %p254
      $region62: #{inception_cell_b.1} parent=59 // pred_check_branch
        %1485 = sbr.rel (%p1483) target = $region64
      $region63: #{inception_cell_b.1} parent=59 // pred_region
        _
      $region64: #{inception_cell_b.1} parent=59 // pred_fallthru
        _
    $region60: #{inception_cell_b.1} parent=5 // pred_fallthru
      _
    %p1486 = scmp.le.s32.totalorder 2, %s16
    // Predicated region
    $region65: #{inception_cell_b.1} parent=5 // pred_check
      %p1487 = pneg %p1486
    $region66: #{inception_cell_b.1} parent=5 // pred_check_branch
      %1489 = sbr.rel (%p1487) target = $region68
    $region67: #{inception_cell_b.1} parent=5 // pred_region
      %s1490 = ssub.s32 %s16, 2
      // Predicated region
      $region69: #{inception_cell_b.1} parent=67 // pred_check
        %p1491 = pneg %p260
      $region70: #{inception_cell_b.1} parent=67 // pred_check_branch
        %1493 = sbr.rel (%p1491) target = $region72
      $region71: #{inception_cell_b.1} parent=67 // pred_region
        %p1494 = scmp.lt.s32.totalorder %s22, 1
        %s1495 = scalar_select %p1494, %s22, 1
        %s1496 = smul.addr %s1495, 8
        %s1497 = smul.addr %s1496, 8
        %s1498 = scalar_lea.vmem %s10, %s1497
      $region72: #{inception_cell_b.1} parent=67 // pred_fallthru
        _
    $region68: #{inception_cell_b.1} parent=5 // pred_fallthru
      _
  $region6: #{inception_cell_b.1} parent=0 // loop_footer
    %s20 = sadd.s32 1, %s16
  $region7: #{inception_cell_b.1} parent=0 // loop_footer_branch
    %15 = sbr.rel target = $region3
  $region8: #{inception_cell_b.1} parent=0 // loop_exit
    _

</llo_original>
